<compile_context>
chip_gen: v7x
topology: tpu7x:2x2x1
jax: 0.10.0
libtpu: 0.0.40
codegen_flags: <defaults>
</compile_context>

<pallas_src>
import functools

import jax
import jax.numpy as jnp
from jax.experimental import pallas as pl
from jax.experimental.pallas import tpu as pltpu


HIDDEN = 400  # fixed by the module definition (nn.Linear(latent_dim, 400))


def _round_up(x, n):
    return (x + n - 1) // n * n


def _dec_kernel(present_ref, idx_ref, z_ref, w1_ref, b1_ref, w2_ref, b2_ref,
                o_ref, acc_ref):
    # Refs per grid step:
    #   present_ref: (n_blocks * M,) int32 in SMEM (scalar prefetch)
    #   idx_ref: (TB, 1) int32      z_ref : (TB, L)
    #   w1_ref : (M, L, Hp)         b1_ref: (M, 1, Hp)     (fully resident)
    #   w2_ref : (M, Hp, Op)        b2_ref: (M, 1, Op)     (fully resident)
    #   o_ref  : (TB, Op)           acc_ref: (TB, Op) f32 scratch
    i = pl.program_id(0)
    num_modules = w1_ref.shape[0]

    z = z_ref[...]                      # (TB, L)
    idx = idx_ref[...]                  # (TB, 1) int32

    acc_ref[...] = jnp.zeros_like(acc_ref)

    # num_modules is small: statically unrolled dense compute + per-row select.
    # Each module is skipped (pl.when) if no sample in this tile routes to it.
    for m in range(num_modules):
        @pl.when(present_ref[i * num_modules + m] > 0)
        def _(m=m):
            h = jnp.dot(z, w1_ref[m], preferred_element_type=jnp.float32)
            h = jnp.maximum(h + b1_ref[m], 0.0)          # ReLU
            o = jnp.dot(h, w2_ref[m], preferred_element_type=jnp.float32)
            o = o + b2_ref[m]
            acc_ref[...] = jnp.where(idx == m, o, acc_ref[...])

    o_ref[...] = jax.nn.sigmoid(acc_ref[...]).astype(o_ref.dtype)


@functools.partial(jax.jit, static_argnames=("block_b",))
def modular_decoder_forward(z, angle_idx, w1, b1, w2, b2, *, block_b=256):
    """z: (B, L) f32; angle_idx: (B,) int; stacked params over num_modules M."""
    B, L = z.shape
    M, _, H = w1.shape
    O = w2.shape[-1]

    Hp = _round_up(H, 128)              # 400 -> 512: lane-dense hidden / contraction
    Op = _round_up(O, 128)              # lane-dense output blocks
    tb = min(block_b, _round_up(B, 8))  # batch tile (multiple of 8 sublanes)
    Bp = _round_up(B, tb)
    n_blocks = Bp // tb

    f32 = jnp.float32
    zp = jnp.zeros((Bp, L), f32).at[:B].set(z.astype(f32))
    idxp = jnp.zeros((Bp, 1), jnp.int32).at[:B, 0].set(angle_idx.astype(jnp.int32))
    w1p = jnp.zeros((M, L, Hp), f32).at[:, :, :H].set(w1.astype(f32))
    b1p = jnp.zeros((M, 1, Hp), f32).at[:, 0, :H].set(b1.astype(f32))
    w2p = jnp.zeros((M, Hp, Op), f32).at[:, :H, :O].set(w2.astype(f32))
    b2p = jnp.zeros((M, 1, Op), f32).at[:, 0, :O].set(b2.astype(f32))
    # TODO(synk): for very large M / output_dim, switch resident W2 to O-tiled
    # blocks (and bf16 weights) to stay inside v7x's 64 MiB VMEM.

    # Per-tile module-presence table (scalar prefetch, read from SMEM inside the
    # kernel).  A module whose samples don't appear in a tile is skipped.
    idx_tiles = idxp[:, 0].reshape(n_blocks, tb)                     # (n_blocks, tb)
    valid = (jnp.arange(Bp) < B).reshape(n_blocks, tb)               # mask pad rows
    present = jnp.any(
        (idx_tiles[:, :, None] == jnp.arange(M)[None, None, :]) & valid[:, :, None],
        axis=1,
    ).astype(jnp.int32).reshape(-1)                                  # (n_blocks * M,)

    weight_bytes = 4 * (w1p.size + b1p.size + w2p.size + b2p.size)
    io_bytes = 4 * 2 * tb * (L + 1 + Op)            # double-buffered z/idx/out tiles
    scratch_bytes = 4 * tb * Op                     # accumulator
    vmem_limit = int(min(max(2 * (weight_bytes + io_bytes + scratch_bytes),
                             32 * 1024 * 1024),
                         48 * 1024 * 1024))

    cost = pl.CostEstimate(
        flops=2 * Bp * M * (L * Hp + Hp * Op),      # upper bound (all modules present)
        transcendentals=Bp * Op,                    # sigmoid
        bytes_accessed=int(weight_bytes + 4 * (zp.size + idxp.size + Bp * Op)),
    )

    grid_spec = pltpu.PrefetchScalarGridSpec(
        num_scalar_prefetch=1,                      # `present` lands in SMEM
        grid=(n_blocks,),
        in_specs=[
            pl.BlockSpec((tb, 1), lambda i, p: (i, 0)),          # angle_idx tile
            pl.BlockSpec((tb, L), lambda i, p: (i, 0)),          # z tile
            pl.BlockSpec((M, L, Hp), lambda i, p: (0, 0, 0)),    # W1 (resident)
            pl.BlockSpec((M, 1, Hp), lambda i, p: (0, 0, 0)),    # b1 (resident)
            pl.BlockSpec((M, Hp, Op), lambda i, p: (0, 0, 0)),   # W2 (resident)
            pl.BlockSpec((M, 1, Op), lambda i, p: (0, 0, 0)),    # b2 (resident)
        ],
        out_specs=pl.BlockSpec((tb, Op), lambda i, p: (i, 0)),
        scratch_shapes=[pltpu.VMEM((tb, Op), jnp.float32)],
    )

    out = pl.pallas_call(
        _dec_kernel,
        out_shape=jax.ShapeDtypeStruct((Bp, Op), jnp.float32),
        grid_spec=grid_spec,
        compiler_params=pltpu.CompilerParams(
            dimension_semantics=("parallel",),
            vmem_limit_bytes=vmem_limit,
        ),
        cost_estimate=cost,
    )(present, idxp, zp, w1p, b1p, w2p, b2p)

    return out[:B, :O]


def init_params(key, latent_dim, output_dim, num_modules):
    """Deterministic synthetic parameters (stacked over modules)."""
    k1, k2, k3, k4 = jax.random.split(key, 4)
    s1 = 1.0 / jnp.sqrt(latent_dim)
    s2 = 1.0 / jnp.sqrt(HIDDEN)
    w1 = jax.random.uniform(k1, (num_modules, latent_dim, HIDDEN),
                            jnp.float32, -s1, s1)
    b1 = jax.random.uniform(k2, (num_modules, HIDDEN), jnp.float32, -s1, s1)
    w2 = jax.random.uniform(k3, (num_modules, HIDDEN, output_dim),
                            jnp.float32, -s2, s2)
    b2 = jax.random.uniform(k4, (num_modules, output_dim), jnp.float32, -s2, s2)
    return w1, b1, w2, b2


def reference_forward(z, angle_idx, w1, b1, w2, b2):
    """Pure-JAX reference matching the PyTorch per-sample routing."""
    outs = []
    for i in range(z.shape[0]):
        m = int(angle_idx[i])
        h = jnp.maximum(z[i] @ w1[m] + b1[m], 0.0)
        outs.append(jax.nn.sigmoid(h @ w2[m] + b2[m]))
    return jnp.stack(outs, axis=0)


if __name__ == "__main__":
    B = 16           # batch
    latent_dim = 8
    output_dim = 64
    num_modules = 3

    key = jax.random.PRNGKey(0)
    kz, ki, kp = jax.random.split(key, 3)

    z = jax.random.normal(kz, (B, latent_dim), jnp.float32)
    angle_idx = jax.random.randint(ki, (B,), 0, num_modules, jnp.int32)
    w1, b1, w2, b2 = init_params(kp, latent_dim, output_dim, num_modules)

    out = modular_decoder_forward(z, angle_idx, w1, b1, w2, b2)
    out = jax.block_until_ready(out)

    ref = reference_forward(z, angle_idx, w1, b1, w2, b2)
    assert out.shape == (B, output_dim)
    assert jnp.allclose(out, ref, atol=2e-5, rtol=2e-5), "mismatch vs reference"

    # Also exercise the "whole batch routed to one module" fast path
    # (equivalent to passing an int angle_idx in the PyTorch module).
    same_idx = jnp.full((B,), 1, jnp.int32)
    out1 = jax.block_until_ready(
        modular_decoder_forward(z, same_idx, w1, b1, w2, b2))
    ref1 = reference_forward(z, same_idx, w1, b1, w2, b2)
    assert jnp.allclose(out1, ref1, atol=2e-5, rtol=2e-5), "mismatch (single module)"

    print("KERNEL_OK")
</pallas_src>

<mosaic_0001>
module attributes {stable_mosaic.version = 11 : i64} {
  func.func @_dec_kernel(%arg0: i32, %arg1: memref<3xi32, #tpu.memory_space<smem>>, %arg2: memref<16x1xi32, #tpu.memory_space<vmem>>, %arg3: memref<16x8xf32, #tpu.memory_space<vmem>>, %arg4: memref<3x8x512xf32, #tpu.memory_space<vmem>>, %arg5: memref<3x1x512xf32, #tpu.memory_space<vmem>>, %arg6: memref<3x512x128xf32, #tpu.memory_space<vmem>>, %arg7: memref<3x1x128xf32, #tpu.memory_space<vmem>>, %arg8: memref<16x128xf32, #tpu.memory_space<vmem>>, %arg9: memref<16x128xf32, #tpu.memory_space<vmem>>) attributes {dimension_semantics = [#tpu.dimension_semantics<parallel>], iteration_bounds = array<i64: 1>, scalar_prefetch = 1 : i64, scratch_operands = 1 : i64, tpu.core_type = #tpu.core_type<tc>, window_params = [{transform_indices = @transform_0, window_bounds = array<i64: 16, 1>}, {transform_indices = @transform_1, window_bounds = array<i64: 16, 8>}, {pipeline_mode = #tpu.pipeline_mode<synchronous>, transform_indices = @transform_2, window_bounds = array<i64: 3, 8, 512>}, {pipeline_mode = #tpu.pipeline_mode<synchronous>, transform_indices = @transform_3, window_bounds = array<i64: 3, 1, 512>}, {pipeline_mode = #tpu.pipeline_mode<synchronous>, transform_indices = @transform_4, window_bounds = array<i64: 3, 512, 128>}, {pipeline_mode = #tpu.pipeline_mode<synchronous>, transform_indices = @transform_5, window_bounds = array<i64: 3, 1, 128>}, {transform_indices = @transform_6, window_bounds = array<i64: 16, 128>}]} {
    %c0 = arith.constant 0 : index
    %c0_0 = arith.constant 0 : index
    %0 = vector.load %arg3[%c0, %c0_0] : memref<16x8xf32, #tpu.memory_space<vmem>>, vector<16x8xf32>
    %c0_1 = arith.constant 0 : index
    %c0_2 = arith.constant 0 : index
    %1 = vector.load %arg2[%c0_1, %c0_2] : memref<16x1xi32, #tpu.memory_space<vmem>>, vector<16x1xi32>
    %cst = arith.constant 0.000000e+00 : f32
    %2 = vector.broadcast %cst : f32 to vector<16x128xf32>
    %c0_3 = arith.constant 0 : index
    %c0_4 = arith.constant 0 : index
    %3 = vector.load %arg9[%c0_3, %c0_4] : memref<16x128xf32, #tpu.memory_space<vmem>>, vector<16x128xf32>
    tpu.vector_store %arg9[%c0_3, %c0_4], %2 {strides = array<i32>} : memref<16x128xf32, #tpu.memory_space<vmem>>, vector<16x128xf32>,
    %c3_i32 = arith.constant 3 : i32
    %4 = arith.muli %arg0, %c3_i32 : i32
    %c0_i32 = arith.constant 0 : i32
    %5 = arith.addi %4, %c0_i32 : i32
    %6 = arith.index_cast %5 : i32 to index
    %7 = memref.load %arg1[%6] : memref<3xi32, #tpu.memory_space<smem>>
    %c0_i32_5 = arith.constant 0 : i32
    %8 = arith.cmpi sgt, %7, %c0_i32_5 : i32
    %9 = arith.extui %8 : i1 to i32
    %c0_i32_6 = arith.constant 0 : i32
    %10 = arith.cmpi ne, %9, %c0_i32_6 : i32
    scf.if %10 {
      %c0_18 = arith.constant 0 : index
      %c0_19 = arith.constant 0 : index
      %c0_20 = arith.constant 0 : index
      %32 = vector.load %arg4[%c0_18, %c0_19, %c0_20] : memref<3x8x512xf32, #tpu.memory_space<vmem>>, vector<1x8x512xf32>
      %33 = vector.shape_cast %32 : vector<1x8x512xf32> to vector<8x512xf32>
      %cst_21 = arith.constant dense<0.000000e+00> : vector<16x512xf32>
      %34 = tpu.matmul %0, %33, %cst_21 {dimension_numbers = #tpu.dot_dimension_numbers<[1], [0], [0], [1], [0, 0, 1, 1], [], []>} : vector<16x8xf32>, vector<8x512xf32>, vector<16x512xf32> -> vector<16x512xf32>
      %c0_22 = arith.constant 0 : index
      %c0_23 = arith.constant 0 : index
      %c0_24 = arith.constant 0 : index
      %35 = vector.load %arg5[%c0_22, %c0_23, %c0_24] : memref<3x1x512xf32, #tpu.memory_space<vmem>>, vector<1x1x512xf32>
      %36 = vector.shape_cast %35 : vector<1x1x512xf32> to vector<1x512xf32>
      %37 = vector.broadcast %36 : vector<1x512xf32> to vector<16x512xf32>
      %38 = arith.addf %34, %37 : vector<16x512xf32>
      %cst_25 = arith.constant 0.000000e+00 : f32
      %39 = vector.broadcast %cst_25 : f32 to vector<16x512xf32>
      %40 = arith.maximumf %38, %39 : vector<16x512xf32>
      %c0_26 = arith.constant 0 : index
      %c0_27 = arith.constant 0 : index
      %c0_28 = arith.constant 0 : index
      %41 = vector.load %arg6[%c0_26, %c0_27, %c0_28] : memref<3x512x128xf32, #tpu.memory_space<vmem>>, vector<1x512x128xf32>
      %42 = vector.shape_cast %41 : vector<1x512x128xf32> to vector<512x128xf32>
      %cst_29 = arith.constant dense<0.000000e+00> : vector<16x128xf32>
      %43 = tpu.matmul %40, %42, %cst_29 {dimension_numbers = #tpu.dot_dimension_numbers<[1], [0], [0], [1], [0, 0, 1, 1], [], []>} : vector<16x512xf32>, vector<512x128xf32>, vector<16x128xf32> -> vector<16x128xf32>
      %c0_30 = arith.constant 0 : index
      %c0_31 = arith.constant 0 : index
      %c0_32 = arith.constant 0 : index
      %44 = vector.load %arg7[%c0_30, %c0_31, %c0_32] : memref<3x1x128xf32, #tpu.memory_space<vmem>>, vector<1x1x128xf32>
      %45 = vector.shape_cast %44 : vector<1x1x128xf32> to vector<1x128xf32>
      %46 = vector.broadcast %45 : vector<1x128xf32> to vector<16x128xf32>
      %47 = arith.addf %43, %46 : vector<16x128xf32>
      %c0_i32_33 = arith.constant 0 : i32
      %48 = vector.broadcast %c0_i32_33 : i32 to vector<16x1xi32>
      %49 = arith.cmpi eq, %1, %48 : vector<16x1xi32>
      %c0_34 = arith.constant 0 : index
      %c0_35 = arith.constant 0 : index
      %50 = vector.load %arg9[%c0_34, %c0_35] : memref<16x128xf32, #tpu.memory_space<vmem>>, vector<16x128xf32>
      %51 = vector.shape_cast %49 : vector<16x1xi1> to vector<16x1xi1>
      %52 = vector.broadcast %51 : vector<16x1xi1> to vector<16x128xi1>
      %53 = arith.select %52, %47, %50 : vector<16x128xi1>, vector<16x128xf32>
      %c0_36 = arith.constant 0 : index
      %c0_37 = arith.constant 0 : index
      %54 = vector.load %arg9[%c0_36, %c0_37] : memref<16x128xf32, #tpu.memory_space<vmem>>, vector<16x128xf32>
      tpu.vector_store %arg9[%c0_36, %c0_37], %53 {strides = array<i32>} : memref<16x128xf32, #tpu.memory_space<vmem>>, vector<16x128xf32>,
    } else {
    }
    %c3_i32_7 = arith.constant 3 : i32
    %11 = arith.muli %arg0, %c3_i32_7 : i32
    %c1_i32 = arith.constant 1 : i32
    %12 = arith.addi %11, %c1_i32 : i32
    %13 = arith.index_cast %12 : i32 to index
    %14 = memref.load %arg1[%13] : memref<3xi32, #tpu.memory_space<smem>>
    %c0_i32_8 = arith.constant 0 : i32
    %15 = arith.cmpi sgt, %14, %c0_i32_8 : i32
    %16 = arith.extui %15 : i1 to i32
    %c0_i32_9 = arith.constant 0 : i32
    %17 = arith.cmpi ne, %16, %c0_i32_9 : i32
    scf.if %17 {
      %c1 = arith.constant 1 : index
      %c0_18 = arith.constant 0 : index
      %c0_19 = arith.constant 0 : index
      %32 = vector.load %arg4[%c1, %c0_18, %c0_19] : memref<3x8x512xf32, #tpu.memory_space<vmem>>, vector<1x8x512xf32>
      %33 = vector.shape_cast %32 : vector<1x8x512xf32> to vector<8x512xf32>
      %cst_20 = arith.constant dense<0.000000e+00> : vector<16x512xf32>
      %34 = tpu.matmul %0, %33, %cst_20 {dimension_numbers = #tpu.dot_dimension_numbers<[1], [0], [0], [1], [0, 0, 1, 1], [], []>} : vector<16x8xf32>, vector<8x512xf32>, vector<16x512xf32> -> vector<16x512xf32>
      %c1_21 = arith.constant 1 : index
      %c0_22 = arith.constant 0 : index
      %c0_23 = arith.constant 0 : index
      %35 = vector.load %arg5[%c1_21, %c0_22, %c0_23] : memref<3x1x512xf32, #tpu.memory_space<vmem>>, vector<1x1x512xf32>
      %36 = vector.shape_cast %35 : vector<1x1x512xf32> to vector<1x512xf32>
      %37 = vector.broadcast %36 : vector<1x512xf32> to vector<16x512xf32>
      %38 = arith.addf %34, %37 : vector<16x512xf32>
      %cst_24 = arith.constant 0.000000e+00 : f32
      %39 = vector.broadcast %cst_24 : f32 to vector<16x512xf32>
      %40 = arith.maximumf %38, %39 : vector<16x512xf32>
      %c1_25 = arith.constant 1 : index
      %c0_26 = arith.constant 0 : index
      %c0_27 = arith.constant 0 : index
      %41 = vector.load %arg6[%c1_25, %c0_26, %c0_27] : memref<3x512x128xf32, #tpu.memory_space<vmem>>, vector<1x512x128xf32>
      %42 = vector.shape_cast %41 : vector<1x512x128xf32> to vector<512x128xf32>
      %cst_28 = arith.constant dense<0.000000e+00> : vector<16x128xf32>
      %43 = tpu.matmul %40, %42, %cst_28 {dimension_numbers = #tpu.dot_dimension_numbers<[1], [0], [0], [1], [0, 0, 1, 1], [], []>} : vector<16x512xf32>, vector<512x128xf32>, vector<16x128xf32> -> vector<16x128xf32>
      %c1_29 = arith.constant 1 : index
      %c0_30 = arith.constant 0 : index
      %c0_31 = arith.constant 0 : index
      %44 = vector.load %arg7[%c1_29, %c0_30, %c0_31] : memref<3x1x128xf32, #tpu.memory_space<vmem>>, vector<1x1x128xf32>
      %45 = vector.shape_cast %44 : vector<1x1x128xf32> to vector<1x128xf32>
      %46 = vector.broadcast %45 : vector<1x128xf32> to vector<16x128xf32>
      %47 = arith.addf %43, %46 : vector<16x128xf32>
      %c1_i32_32 = arith.constant 1 : i32
      %48 = vector.broadcast %c1_i32_32 : i32 to vector<16x1xi32>
      %49 = arith.cmpi eq, %1, %48 : vector<16x1xi32>
      %c0_33 = arith.constant 0 : index
      %c0_34 = arith.constant 0 : index
      %50 = vector.load %arg9[%c0_33, %c0_34] : memref<16x128xf32, #tpu.memory_space<vmem>>, vector<16x128xf32>
      %51 = vector.shape_cast %49 : vector<16x1xi1> to vector<16x1xi1>
      %52 = vector.broadcast %51 : vector<16x1xi1> to vector<16x128xi1>
      %53 = arith.select %52, %47, %50 : vector<16x128xi1>, vector<16x128xf32>
      %c0_35 = arith.constant 0 : index
      %c0_36 = arith.constant 0 : index
      %54 = vector.load %arg9[%c0_35, %c0_36] : memref<16x128xf32, #tpu.memory_space<vmem>>, vector<16x128xf32>
      tpu.vector_store %arg9[%c0_35, %c0_36], %53 {strides = array<i32>} : memref<16x128xf32, #tpu.memory_space<vmem>>, vector<16x128xf32>,
    } else {
    }
    %c3_i32_10 = arith.constant 3 : i32
    %18 = arith.muli %arg0, %c3_i32_10 : i32
    %c2_i32 = arith.constant 2 : i32
    %19 = arith.addi %18, %c2_i32 : i32
    %20 = arith.index_cast %19 : i32 to index
    %21 = memref.load %arg1[%20] : memref<3xi32, #tpu.memory_space<smem>>
    %c0_i32_11 = arith.constant 0 : i32
    %22 = arith.cmpi sgt, %21, %c0_i32_11 : i32
    %23 = arith.extui %22 : i1 to i32
    %c0_i32_12 = arith.constant 0 : i32
    %24 = arith.cmpi ne, %23, %c0_i32_12 : i32
    scf.if %24 {
      %c2 = arith.constant 2 : index
      %c0_18 = arith.constant 0 : index
      %c0_19 = arith.constant 0 : index
      %32 = vector.load %arg4[%c2, %c0_18, %c0_19] : memref<3x8x512xf32, #tpu.memory_space<vmem>>, vector<1x8x512xf32>
      %33 = vector.shape_cast %32 : vector<1x8x512xf32> to vector<8x512xf32>
      %cst_20 = arith.constant dense<0.000000e+00> : vector<16x512xf32>
      %34 = tpu.matmul %0, %33, %cst_20 {dimension_numbers = #tpu.dot_dimension_numbers<[1], [0], [0], [1], [0, 0, 1, 1], [], []>} : vector<16x8xf32>, vector<8x512xf32>, vector<16x512xf32> -> vector<16x512xf32>
      %c2_21 = arith.constant 2 : index
      %c0_22 = arith.constant 0 : index
      %c0_23 = arith.constant 0 : index
      %35 = vector.load %arg5[%c2_21, %c0_22, %c0_23] : memref<3x1x512xf32, #tpu.memory_space<vmem>>, vector<1x1x512xf32>
      %36 = vector.shape_cast %35 : vector<1x1x512xf32> to vector<1x512xf32>
      %37 = vector.broadcast %36 : vector<1x512xf32> to vector<16x512xf32>
      %38 = arith.addf %34, %37 : vector<16x512xf32>
      %cst_24 = arith.constant 0.000000e+00 : f32
      %39 = vector.broadcast %cst_24 : f32 to vector<16x512xf32>
      %40 = arith.maximumf %38, %39 : vector<16x512xf32>
      %c2_25 = arith.constant 2 : index
      %c0_26 = arith.constant 0 : index
      %c0_27 = arith.constant 0 : index
      %41 = vector.load %arg6[%c2_25, %c0_26, %c0_27] : memref<3x512x128xf32, #tpu.memory_space<vmem>>, vector<1x512x128xf32>
      %42 = vector.shape_cast %41 : vector<1x512x128xf32> to vector<512x128xf32>
      %cst_28 = arith.constant dense<0.000000e+00> : vector<16x128xf32>
      %43 = tpu.matmul %40, %42, %cst_28 {dimension_numbers = #tpu.dot_dimension_numbers<[1], [0], [0], [1], [0, 0, 1, 1], [], []>} : vector<16x512xf32>, vector<512x128xf32>, vector<16x128xf32> -> vector<16x128xf32>
      %c2_29 = arith.constant 2 : index
      %c0_30 = arith.constant 0 : index
      %c0_31 = arith.constant 0 : index
      %44 = vector.load %arg7[%c2_29, %c0_30, %c0_31] : memref<3x1x128xf32, #tpu.memory_space<vmem>>, vector<1x1x128xf32>
      %45 = vector.shape_cast %44 : vector<1x1x128xf32> to vector<1x128xf32>
      %46 = vector.broadcast %45 : vector<1x128xf32> to vector<16x128xf32>
      %47 = arith.addf %43, %46 : vector<16x128xf32>
      %c2_i32_32 = arith.constant 2 : i32
      %48 = vector.broadcast %c2_i32_32 : i32 to vector<16x1xi32>
      %49 = arith.cmpi eq, %1, %48 : vector<16x1xi32>
      %c0_33 = arith.constant 0 : index
      %c0_34 = arith.constant 0 : index
      %50 = vector.load %arg9[%c0_33, %c0_34] : memref<16x128xf32, #tpu.memory_space<vmem>>, vector<16x128xf32>
      %51 = vector.shape_cast %49 : vector<16x1xi1> to vector<16x1xi1>
      %52 = vector.broadcast %51 : vector<16x1xi1> to vector<16x128xi1>
      %53 = arith.select %52, %47, %50 : vector<16x128xi1>, vector<16x128xf32>
      %c0_35 = arith.constant 0 : index
      %c0_36 = arith.constant 0 : index
      %54 = vector.load %arg9[%c0_35, %c0_36] : memref<16x128xf32, #tpu.memory_space<vmem>>, vector<16x128xf32>
      tpu.vector_store %arg9[%c0_35, %c0_36], %53 {strides = array<i32>} : memref<16x128xf32, #tpu.memory_space<vmem>>, vector<16x128xf32>,
    } else {
    }
    %c0_13 = arith.constant 0 : index
    %c0_14 = arith.constant 0 : index
    %25 = vector.load %arg9[%c0_13, %c0_14] : memref<16x128xf32, #tpu.memory_space<vmem>>, vector<16x128xf32>
    %26 = arith.negf %25 : vector<16x128xf32>
    %27 = math.exp %26 : vector<16x128xf32>
    %cst_15 = arith.constant 1.000000e+00 : f32
    %28 = vector.broadcast %cst_15 : f32 to vector<16x128xf32>
    %29 = arith.addf %28, %27 : vector<16x128xf32>
    %30 = arith.divf %28, %29 : vector<16x128xf32>
    %c0_16 = arith.constant 0 : index
    %c0_17 = arith.constant 0 : index
    %31 = vector.load %arg8[%c0_16, %c0_17] : memref<16x128xf32, #tpu.memory_space<vmem>>, vector<16x128xf32>
    tpu.vector_store %arg8[%c0_16, %c0_17], %30 {strides = array<i32>} : memref<16x128xf32, #tpu.memory_space<vmem>>, vector<16x128xf32>,
    return
  }
  func.func @transform_0(%arg0: i32, %arg1: memref<3xi32, #tpu.memory_space<smem>>) -> (i32, i32) {
    %c0_i32 = arith.constant 0 : i32
    %c0_i32_0 = arith.constant 0 : i32
    return %arg0, %c0_i32 : i32, i32
  }
  func.func @transform_1(%arg0: i32, %arg1: memref<3xi32, #tpu.memory_space<smem>>) -> (i32, i32) {
    %c0_i32 = arith.constant 0 : i32
    %c0_i32_0 = arith.constant 0 : i32
    return %arg0, %c0_i32 : i32, i32
  }
  func.func @transform_2(%arg0: i32, %arg1: memref<3xi32, #tpu.memory_space<smem>>) -> (i32, i32, i32) {
    %c0_i32 = arith.constant 0 : i32
    %c0_i32_0 = arith.constant 0 : i32
    %c0_i32_1 = arith.constant 0 : i32
    %c0_i32_2 = arith.constant 0 : i32
    return %c0_i32, %c0_i32_0, %c0_i32_1 : i32, i32, i32
  }
  func.func @transform_3(%arg0: i32, %arg1: memref<3xi32, #tpu.memory_space<smem>>) -> (i32, i32, i32) {
    %c0_i32 = arith.constant 0 : i32
    %c0_i32_0 = arith.constant 0 : i32
    %c0_i32_1 = arith.constant 0 : i32
    %c0_i32_2 = arith.constant 0 : i32
    return %c0_i32, %c0_i32_0, %c0_i32_1 : i32, i32, i32
  }
  func.func @transform_4(%arg0: i32, %arg1: memref<3xi32, #tpu.memory_space<smem>>) -> (i32, i32, i32) {
    %c0_i32 = arith.constant 0 : i32
    %c0_i32_0 = arith.constant 0 : i32
    %c0_i32_1 = arith.constant 0 : i32
    %c0_i32_2 = arith.constant 0 : i32
    return %c0_i32, %c0_i32_0, %c0_i32_1 : i32, i32, i32
  }
  func.func @transform_5(%arg0: i32, %arg1: memref<3xi32, #tpu.memory_space<smem>>) -> (i32, i32, i32) {
    %c0_i32 = arith.constant 0 : i32
    %c0_i32_0 = arith.constant 0 : i32
    %c0_i32_1 = arith.constant 0 : i32
    %c0_i32_2 = arith.constant 0 : i32
    return %c0_i32, %c0_i32_0, %c0_i32_1 : i32, i32, i32
  }
  func.func @transform_6(%arg0: i32, %arg1: memref<3xi32, #tpu.memory_space<smem>>) -> (i32, i32) {
    %c0_i32 = arith.constant 0 : i32
    %c0_i32_0 = arith.constant 0 : i32
    return %arg0, %c0_i32 : i32, i32
  }
}

</mosaic_0001>

<llo_original>
// kernel: modular_decoder_forward.1
$region0: #{modular_decoder_forward.1}
  #allocation0 [shape = 'u32[]', space=smem, size = 0x4, offset = 0x4, fixed_abs, tag = 'smem constant byte address 0x4 - core index']
  #allocation1 [shape = 'u32[144,128]{1,0:T(1,128)}', space=vmem, size = 0x12000, scoped, tag = 'internal scratch']
  #allocation2 [shape = 'f32[16,128]{1,0:T(8,128)}', space=vmem, size = 0x2000, scoped, tag = 'scratch operand']
  #allocation3 [shape = 's32[1]{0}', space=sflag, size = 0x4, scoped, tag = 'scoped memory for modular_decoder_forward.1']
  #allocation4 [shape = 'u8[512]{0}', space=smem, size = 0x200, scoped, tag = 'prefetched SMEM operand 0']
  %s0 = inlined_call_operand.vmem [shape: s32[3], index: 0, kind: input, shape index: {}]
  %s1 = inlined_call_operand.vmem [shape: s32[16,1], index: 1, kind: input, shape index: {}]
  %s2 = inlined_call_operand.vmem [shape: f32[16,8], index: 2, kind: input, shape index: {}]
  %s3 = inlined_call_operand.vmem [shape: f32[3,8,512], index: 3, kind: input, shape index: {}]
  %s4 = inlined_call_operand.vmem [shape: f32[3,1,512], index: 4, kind: input, shape index: {}]
  %s5 = inlined_call_operand.vmem [shape: f32[3,512,128], index: 5, kind: input, shape index: {}]
  %s6 = inlined_call_operand.vmem [shape: f32[3,1,128], index: 6, kind: input, shape index: {}]
  %s7 = inlined_call_operand.hbm [shape: f32[16,128], index: 7, kind: output, shape index: {}]
  %s8 = sld [smem:[#allocation0]]
  $region46: #{modular_decoder_forward.1} parent=0
    _
  %s10 = ssub.s32 1, %s8
  %s11 = scalar_select 0, %s10, %s8
  %s12 = sshll.u32 %s0, 4
  %s13 = int_to_ptr.vmem [resolvable:$true] %s12
  %15 = dma.vmem_to_smem %s13, 16, [#allocation4], [#allocation3]
  %16 = dma.done [#allocation3], 16
  %17 = sfence
  $region1: #{modular_decoder_forward.1} parent=0
    #allocation5 [shape = 'u8[8192]{0}', space=vmem, size = 0x2000, scoped, tag = 'output window, operand 0, single buffered']
    #allocation6 [shape = 's32[1]{0}', space=sflag, size = 0x4, scoped, tag = 'scoped memory for modular_decoder_forward.1']
    %18 = vsyncpa [#allocation6], 0
    // Predicated region
    $region2: #{modular_decoder_forward.1} parent=1 // pred_check
      _
    $region3: #{modular_decoder_forward.1} parent=1 // pred_check_branch
      %20 = sbr.rel (0) target = $region5
    $region4: #{modular_decoder_forward.1} parent=1 // pred_region
      _
    $region5: #{modular_decoder_forward.1} parent=1 // pred_fallthru
      _
    // Predicated region
    $region6: #{modular_decoder_forward.1} parent=1 // pred_check
      _
    $region7: #{modular_decoder_forward.1} parent=1 // pred_check_branch
      %22 = sbr.rel (0) target = $region9
    $region8: #{modular_decoder_forward.1} parent=1 // pred_region
      _
    $region9: #{modular_decoder_forward.1} parent=1 // pred_fallthru
      _
    // Predicated region
    $region10: #{modular_decoder_forward.1} parent=1 // pred_check
      _
    $region11: #{modular_decoder_forward.1} parent=1 // pred_check_branch
      %24 = sbr.rel (0) target = $region13
    $region12: #{modular_decoder_forward.1} parent=1 // pred_region
      _
    $region13: #{modular_decoder_forward.1} parent=1 // pred_fallthru
      _
    // Predicated region
    $region14: #{modular_decoder_forward.1} parent=1 // pred_check
      _
    $region15: #{modular_decoder_forward.1} parent=1 // pred_check_branch
      %26 = sbr.rel (0) target = $region17
    $region16: #{modular_decoder_forward.1} parent=1 // pred_region
      _
    $region17: #{modular_decoder_forward.1} parent=1 // pred_fallthru
      _
    // Predicated region
    $region18: #{modular_decoder_forward.1} parent=1 // pred_check
      _
    $region19: #{modular_decoder_forward.1} parent=1 // pred_check_branch
      %28 = sbr.rel (0) target = $region21
    $region20: #{modular_decoder_forward.1} parent=1 // pred_region
      _
    $region21: #{modular_decoder_forward.1} parent=1 // pred_fallthru
      _
    // Predicated region
    $region22: #{modular_decoder_forward.1} parent=1 // pred_check
      _
    $region23: #{modular_decoder_forward.1} parent=1 // pred_check_branch
      %30 = sbr.rel (0) target = $region25
    $region24: #{modular_decoder_forward.1} parent=1 // pred_region
      _
    $region25: #{modular_decoder_forward.1} parent=1 // pred_fallthru
      _
    %v31 = vld [vmem:[%s2] sm:$0xff]
    %v32 = vld [vmem:[%s2 + $0x8] sm:$0xff]
    %v33 = vld [vmem:[%s1] sm:$0xff]
    %v34 = vld [vmem:[%s1 + $0x8] sm:$0xff]
    %35 = vst [vmem:[#allocation2] sm:$0xff] 0.0
    %36 = vst [vmem:[#allocation2 + $0x8] sm:$0xff] 0.0
    %s37 = smul.u32 0, 3
    %s38 = sld [smem:[#allocation4 + %s37]]
    %p39 = scmp.gt.s32.totalorder %s38, 0
    // Predicated region
    $region26: #{modular_decoder_forward.1} parent=1 // pred_check
      %p40 = pneg %p39
    $region27: #{modular_decoder_forward.1} parent=1 // pred_check_branch
      %42 = sbr.rel (%p40) target = $region29
    $region28: #{modular_decoder_forward.1} parent=1 // pred_region
      %v43 = vld [vmem:[%s3] sm:$0xff]
      %v44 = vld [vmem:[%s3 + $0x8] sm:$0xff]
      %v45 = vld [vmem:[%s3 + $0x10] sm:$0xff]
      %v46 = vld [vmem:[%s3 + $0x18] sm:$0xff]
      %v47 = vld [vmem:[%s4] sm:$0xf]
      %v49 = vlaneseq
      %v50 = vshrl.u32 %v49, 7
      %v51 = vsub.s32 0, %v50
      %v52 = vrot.slane %v47, %v51
      %v53 = vlaneseq
      %v54 = vshrl.u32 %v53, 7
      %v55 = vsub.s32 1, %v54
      %v56 = vrot.slane %v47, %v55
      %v57 = vlaneseq
      %v58 = vshrl.u32 %v57, 7
      %v59 = vsub.s32 2, %v58
      %v60 = vrot.slane %v47, %v59
      %v61 = vlaneseq
      %v62 = vshrl.u32 %v61, 7
      %v63 = vsub.s32 3, %v62
      %v64 = vrot.slane %v47, %v63
      %vm69 = vcmask 64512
      %v71 = vsel %vm69, %v31, 0
      %v74 = vsel %vm69, %v32, 0
      %76 = vmatprep.subr.mxu0 %v44
      %77 = vmatpush1.msra.mxu0 %v43
      %78 = vmatprep.subr.mxu0 0.0
      %79 = vmatpush1.msra.mxu0 0.0
      %80 = vmatprep.subr.mxu0 0.0
      %81 = vmatpush1.msra.mxu0 0.0
      %82 = vmatprep.subr.mxu0 0.0
      %83 = vmatpush1.msra.mxu0 0.0
      %84 = vmatprep.subr.mxu0 0.0
      %85 = vmatpush1.msra.mxu0 0.0
      %86 = vmatprep.subr.mxu0 0.0
      %87 = vmatpush1.msra.mxu0 0.0
      %88 = vmatprep.subr.mxu0 0.0
      %89 = vmatpush1.msra.mxu0 0.0
      %90 = vmatprep.subr.mxu0 0.0
      %91 = vmatpush1.msra.mxu0 0.0
      %92 = vmatprep.subr.mxu0 0.0
      %93 = vmatpush1.msra.mxu0 0.0
      %94 = vmatprep.subr.mxu0 0.0
      %95 = vmatpush1.msra.mxu0 0.0
      %96 = vmatprep.subr.mxu0 0.0
      %97 = vmatpush1.msra.mxu0 0.0
      %98 = vmatprep.subr.mxu0 0.0
      %99 = vmatpush1.msra.mxu0 0.0
      %100 = vmatprep.subr.mxu0 0.0
      %101 = vmatpush1.msra.mxu0 0.0
      %102 = vmatprep.subr.mxu0 0.0
      %103 = vmatpush1.msra.mxu0 0.0
      %104 = vmatprep.subr.mxu0 0.0
      %105 = vmatpush1.msra.mxu0 0.0
      %106 = vmatprep.subr.mxu0 0.0
      %107 = vmatpush1.msra.mxu0 0.0
      %108 = vmatprep.subr.mxu0 0.0
      %109 = vmatpush1.msra.mxu0 0.0
      %110 = vmatprep.subr.mxu0 0.0
      %111 = vmatpush1.msra.mxu0 0.0
      %112 = vmatprep.subr.mxu0 0.0
      %113 = vmatpush1.msra.mxu0 0.0
      %114 = vmatprep.subr.mxu0 0.0
      %115 = vmatpush1.msra.mxu0 0.0
      %116 = vmatprep.subr.mxu0 0.0
      %117 = vmatpush1.msra.mxu0 0.0
      %118 = vmatprep.subr.mxu0 0.0
      %119 = vmatpush1.msra.mxu0 0.0
      %120 = vmatprep.subr.mxu0 0.0
      %121 = vmatpush1.msra.mxu0 0.0
      %122 = vmatprep.subr.mxu0 0.0
      %123 = vmatpush1.msra.mxu0 0.0
      %124 = vmatprep.subr.mxu0 0.0
      %125 = vmatpush1.msra.mxu0 0.0
      %126 = vmatprep.subr.mxu0 0.0
      %127 = vmatpush1.msra.mxu0 0.0
      %128 = vmatprep.subr.mxu0 0.0
      %129 = vmatpush1.msra.mxu0 0.0
      %130 = vmatprep.subr.mxu0 0.0
      %131 = vmatpush1.msra.mxu0 0.0
      %132 = vmatprep.subr.mxu0 0.0
      %133 = vmatpush1.msra.mxu0 0.0
      %134 = vmatprep.subr.mxu0 0.0
      %135 = vmatpush1.msra.mxu0 0.0
      %136 = vmatprep.subr.mxu0 0.0
      %137 = vmatpush1.msra.mxu0 0.0
      %138 = vmatprep.subr.mxu0 0.0
      %139 = vmatpush1.msra.mxu0 0.0
      %140 = vmatprep.mubr.f32.mxu0 0.0
      %141 = vmatmul.mubr.f32.gmra.mrb[0].mxu0 %v71
      %v142 = vpop.f32.mrb[0].mxu0
      %v143 = vadd.f32 %v52, %v142
      %v144 = vpop.f32.mrb[0].mxu0
      %v145 = vadd.f32 %v56, %v144
      %146 = vmatprep.mubr.f32.mxu0 0.0
      %147 = vmatmul.mubr.f32.gmra.mrb[0].mxu0 %v74
      %v148 = vpop.f32.mrb[0].mxu0
      %v149 = vadd.f32 %v52, %v148
      %v150 = vpop.f32.mrb[0].mxu0
      %v151 = vadd.f32 %v56, %v150
      %152 = vdwg.mxu0
      %153 = vmatprep.subr.mxu0 %v46
      %154 = vmatpush1.msra.mxu0 %v45
      %155 = vmatprep.subr.mxu0 0.0
      %156 = vmatpush1.msra.mxu0 0.0
      %157 = vmatprep.subr.mxu0 0.0
      %158 = vmatpush1.msra.mxu0 0.0
      %159 = vmatprep.subr.mxu0 0.0
      %160 = vmatpush1.msra.mxu0 0.0
      %161 = vmatprep.subr.mxu0 0.0
      %162 = vmatpush1.msra.mxu0 0.0
      %163 = vmatprep.subr.mxu0 0.0
      %164 = vmatpush1.msra.mxu0 0.0
      %165 = vmatprep.subr.mxu0 0.0
      %166 = vmatpush1.msra.mxu0 0.0
      %167 = vmatprep.subr.mxu0 0.0
      %168 = vmatpush1.msra.mxu0 0.0
      %169 = vmatprep.subr.mxu0 0.0
      %170 = vmatpush1.msra.mxu0 0.0
      %171 = vmatprep.subr.mxu0 0.0
      %172 = vmatpush1.msra.mxu0 0.0
      %173 = vmatprep.subr.mxu0 0.0
      %174 = vmatpush1.msra.mxu0 0.0
      %175 = vmatprep.subr.mxu0 0.0
      %176 = vmatpush1.msra.mxu0 0.0
      %177 = vmatprep.subr.mxu0 0.0
      %178 = vmatpush1.msra.mxu0 0.0
      %179 = vmatprep.subr.mxu0 0.0
      %180 = vmatpush1.msra.mxu0 0.0
      %181 = vmatprep.subr.mxu0 0.0
      %182 = vmatpush1.msra.mxu0 0.0
      %183 = vmatprep.subr.mxu0 0.0
      %184 = vmatpush1.msra.mxu0 0.0
      %185 = vmatprep.subr.mxu0 0.0
      %186 = vmatpush1.msra.mxu0 0.0
      %187 = vmatprep.subr.mxu0 0.0
      %188 = vmatpush1.msra.mxu0 0.0
      %189 = vmatprep.subr.mxu0 0.0
      %190 = vmatpush1.msra.mxu0 0.0
      %191 = vmatprep.subr.mxu0 0.0
      %192 = vmatpush1.msra.mxu0 0.0
      %193 = vmatprep.subr.mxu0 0.0
      %194 = vmatpush1.msra.mxu0 0.0
      %195 = vmatprep.subr.mxu0 0.0
      %196 = vmatpush1.msra.mxu0 0.0
      %197 = vmatprep.subr.mxu0 0.0
      %198 = vmatpush1.msra.mxu0 0.0
      %199 = vmatprep.subr.mxu0 0.0
      %200 = vmatpush1.msra.mxu0 0.0
      %201 = vmatprep.subr.mxu0 0.0
      %202 = vmatpush1.msra.mxu0 0.0
      %203 = vmatprep.subr.mxu0 0.0
      %204 = vmatpush1.msra.mxu0 0.0
      %205 = vmatprep.subr.mxu0 0.0
      %206 = vmatpush1.msra.mxu0 0.0
      %207 = vmatprep.subr.mxu0 0.0
      %208 = vmatpush1.msra.mxu0 0.0
      %209 = vmatprep.subr.mxu0 0.0
      %210 = vmatpush1.msra.mxu0 0.0
      %211 = vmatprep.subr.mxu0 0.0
      %212 = vmatpush1.msra.mxu0 0.0
      %213 = vmatprep.subr.mxu0 0.0
      %214 = vmatpush1.msra.mxu0 0.0
      %215 = vmatprep.subr.mxu0 0.0
      %216 = vmatpush1.msra.mxu0 0.0
      %217 = vmatprep.mubr.f32.mxu0 0.0
      %218 = vmatmul.mubr.f32.gmra.mrb[0].mxu0 %v71
      %v219 = vpop.f32.mrb[0].mxu0
      %v220 = vadd.f32 %v60, %v219
      %v221 = vpop.f32.mrb[0].mxu0
      %v222 = vadd.f32 %v64, %v221
      %223 = vmatprep.mubr.f32.mxu0 0.0
      %224 = vmatmul.mubr.f32.gmra.mrb[0].mxu0 %v74
      %v225 = vpop.f32.mrb[0].mxu0
      %v226 = vadd.f32 %v60, %v225
      %v227 = vpop.f32.mrb[0].mxu0
      %v228 = vadd.f32 %v64, %v227
      %229 = vdwg.mxu0
      %v230 = vmax.f32 %v143, 0.0
      %v231 = vmax.f32 %v145, 0.0
      %v232 = vmax.f32 %v220, 0.0
      %v233 = vmax.f32 %v222, 0.0
      %v234 = vmax.f32 %v149, 0.0
      %v235 = vmax.f32 %v151, 0.0
      %v236 = vmax.f32 %v226, 0.0
      %v237 = vmax.f32 %v228, 0.0
      %v238 = vld [vmem:[%s5] sm:$0xff]
      %v239 = vld [vmem:[%s5 + $0x8] sm:$0xff]
      %v240 = vld [vmem:[%s5 + $0x10] sm:$0xff]
      %v241 = vld [vmem:[%s5 + $0x18] sm:$0xff]
      %v242 = vld [vmem:[%s5 + $0x20] sm:$0xff]
      %v243 = vld [vmem:[%s5 + $0x28] sm:$0xff]
      %v244 = vld [vmem:[%s5 + $0x30] sm:$0xff]
      %v245 = vld [vmem:[%s5 + $0x38] sm:$0xff]
      %v246 = vld [vmem:[%s5 + $0x40] sm:$0xff]
      %v247 = vld [vmem:[%s5 + $0x48] sm:$0xff]
      %v248 = vld [vmem:[%s5 + $0x50] sm:$0xff]
      %v249 = vld [vmem:[%s5 + $0x58] sm:$0xff]
      %v250 = vld [vmem:[%s5 + $0x60] sm:$0xff]
      %v251 = vld [vmem:[%s5 + $0x68] sm:$0xff]
      %v252 = vld [vmem:[%s5 + $0x70] sm:$0xff]
      %v253 = vld [vmem:[%s5 + $0x78] sm:$0xff]
      %v254 = vld [vmem:[%s5 + $0x80] sm:$0xff]
      %v255 = vld [vmem:[%s5 + $0x88] sm:$0xff]
      %v256 = vld [vmem:[%s5 + $0x90] sm:$0xff]
      %v257 = vld [vmem:[%s5 + $0x98] sm:$0xff]
      %v258 = vld [vmem:[%s5 + $0xa0] sm:$0xff]
      %v259 = vld [vmem:[%s5 + $0xa8] sm:$0xff]
      %v260 = vld [vmem:[%s5 + $0xb0] sm:$0xff]
      %v261 = vld [vmem:[%s5 + $0xb8] sm:$0xff]
      %v262 = vld [vmem:[%s5 + $0xc0] sm:$0xff]
      %v263 = vld [vmem:[%s5 + $0xc8] sm:$0xff]
      %v264 = vld [vmem:[%s5 + $0xd0] sm:$0xff]
      %v265 = vld [vmem:[%s5 + $0xd8] sm:$0xff]
      %v266 = vld [vmem:[%s5 + $0xe0] sm:$0xff]
      %v267 = vld [vmem:[%s5 + $0xe8] sm:$0xff]
      %v268 = vld [vmem:[%s5 + $0xf0] sm:$0xff]
      %v269 = vld [vmem:[%s5 + $0xf8] sm:$0xff]
      %v270 = vld [vmem:[%s5 + $0x100] sm:$0xff]
      %v271 = vld [vmem:[%s5 + $0x108] sm:$0xff]
      %v272 = vld [vmem:[%s5 + $0x110] sm:$0xff]
      %v273 = vld [vmem:[%s5 + $0x118] sm:$0xff]
      %v274 = vld [vmem:[%s5 + $0x120] sm:$0xff]
      %v275 = vld [vmem:[%s5 + $0x128] sm:$0xff]
      %v276 = vld [vmem:[%s5 + $0x130] sm:$0xff]
      %v277 = vld [vmem:[%s5 + $0x138] sm:$0xff]
      %v278 = vld [vmem:[%s5 + $0x140] sm:$0xff]
      %v279 = vld [vmem:[%s5 + $0x148] sm:$0xff]
      %v280 = vld [vmem:[%s5 + $0x150] sm:$0xff]
      %v281 = vld [vmem:[%s5 + $0x158] sm:$0xff]
      %v282 = vld [vmem:[%s5 + $0x160] sm:$0xff]
      %v283 = vld [vmem:[%s5 + $0x168] sm:$0xff]
      %v284 = vld [vmem:[%s5 + $0x170] sm:$0xff]
      %v285 = vld [vmem:[%s5 + $0x178] sm:$0xff]
      %v286 = vld [vmem:[%s5 + $0x180] sm:$0xff]
      %v287 = vld [vmem:[%s5 + $0x188] sm:$0xff]
      %v288 = vld [vmem:[%s5 + $0x190] sm:$0xff]
      %v289 = vld [vmem:[%s5 + $0x198] sm:$0xff]
      %v290 = vld [vmem:[%s5 + $0x1a0] sm:$0xff]
      %v291 = vld [vmem:[%s5 + $0x1a8] sm:$0xff]
      %v292 = vld [vmem:[%s5 + $0x1b0] sm:$0xff]
      %v293 = vld [vmem:[%s5 + $0x1b8] sm:$0xff]
      %v294 = vld [vmem:[%s5 + $0x1c0] sm:$0xff]
      %v295 = vld [vmem:[%s5 + $0x1c8] sm:$0xff]
      %v296 = vld [vmem:[%s5 + $0x1d0] sm:$0xff]
      %v297 = vld [vmem:[%s5 + $0x1d8] sm:$0xff]
      %v298 = vld [vmem:[%s5 + $0x1e0] sm:$0xff]
      %v299 = vld [vmem:[%s5 + $0x1e8] sm:$0xff]
      %v300 = vld [vmem:[%s5 + $0x1f0] sm:$0xff]
      %v301 = vld [vmem:[%s5 + $0x1f8] sm:$0xff]
      %v302 = vld [vmem:[%s6] sm:$0x1]
      %v304 = vlaneseq
      %v305 = vshrl.u32 %v304, 7
      %v306 = vsub.s32 0, %v305
      %v307 = vrot.slane %v302, %v306
      %309 = vmatprep.subr.mxu0 0.0
      %310 = vmatpush1.msra.mxu0 %v238
      %311 = vmatprep.subr.mxu0 0.0
      %312 = vmatpush1.msra.mxu0 %v239
      %313 = vmatprep.subr.mxu0 0.0
      %314 = vmatpush1.msra.mxu0 %v240
      %315 = vmatprep.subr.mxu0 0.0
      %316 = vmatpush1.msra.mxu0 %v241
      %317 = vmatprep.subr.mxu0 0.0
      %318 = vmatpush1.msra.mxu0 %v242
      %319 = vmatprep.subr.mxu0 0.0
      %320 = vmatpush1.msra.mxu0 %v243
      %321 = vmatprep.subr.mxu0 0.0
      %322 = vmatpush1.msra.mxu0 %v244
      %323 = vmatprep.subr.mxu0 0.0
      %324 = vmatpush1.msra.mxu0 %v245
      %325 = vmatprep.subr.mxu0 0.0
      %326 = vmatpush1.msra.mxu0 %v246
      %327 = vmatprep.subr.mxu0 0.0
      %328 = vmatpush1.msra.mxu0 %v247
      %329 = vmatprep.subr.mxu0 0.0
      %330 = vmatpush1.msra.mxu0 %v248
      %331 = vmatprep.subr.mxu0 0.0
      %332 = vmatpush1.msra.mxu0 %v249
      %333 = vmatprep.subr.mxu0 0.0
      %334 = vmatpush1.msra.mxu0 %v250
      %335 = vmatprep.subr.mxu0 0.0
      %336 = vmatpush1.msra.mxu0 %v251
      %337 = vmatprep.subr.mxu0 0.0
      %338 = vmatpush1.msra.mxu0 %v252
      %339 = vmatprep.subr.mxu0 0.0
      %340 = vmatpush1.msra.mxu0 %v253
      %341 = vmatprep.subr.mxu0 0.0
      %342 = vmatpush1.msra.mxu0 %v254
      %343 = vmatprep.subr.mxu0 0.0
      %344 = vmatpush1.msra.mxu0 %v255
      %345 = vmatprep.subr.mxu0 0.0
      %346 = vmatpush1.msra.mxu0 %v256
      %347 = vmatprep.subr.mxu0 0.0
      %348 = vmatpush1.msra.mxu0 %v257
      %349 = vmatprep.subr.mxu0 0.0
      %350 = vmatpush1.msra.mxu0 %v258
      %351 = vmatprep.subr.mxu0 0.0
      %352 = vmatpush1.msra.mxu0 %v259
      %353 = vmatprep.subr.mxu0 0.0
      %354 = vmatpush1.msra.mxu0 %v260
      %355 = vmatprep.subr.mxu0 0.0
      %356 = vmatpush1.msra.mxu0 %v261
      %357 = vmatprep.subr.mxu0 0.0
      %358 = vmatpush1.msra.mxu0 %v262
      %359 = vmatprep.subr.mxu0 0.0
      %360 = vmatpush1.msra.mxu0 %v263
      %361 = vmatprep.subr.mxu0 0.0
      %362 = vmatpush1.msra.mxu0 %v264
      %363 = vmatprep.subr.mxu0 0.0
      %364 = vmatpush1.msra.mxu0 %v265
      %365 = vmatprep.subr.mxu0 0.0
      %366 = vmatpush1.msra.mxu0 %v266
      %367 = vmatprep.subr.mxu0 0.0
      %368 = vmatpush1.msra.mxu0 %v267
      %369 = vmatprep.subr.mxu0 0.0
      %370 = vmatpush1.msra.mxu0 %v268
      %371 = vmatprep.subr.mxu0 0.0
      %372 = vmatpush1.msra.mxu0 %v269
      %373 = vmatprep.mubr.f32.mxu0 %v231
      %374 = vmatmul.mubr.f32.gmra.mrb[0].mxu0 %v230
      %v375 = vpop.f32.mrb[0].mxu0
      %v376 = vadd.f32 %v307, %v375
      %v377 = vpop.f32.mrb[0].mxu0
      %378 = vmatprep.mubr.f32.mxu0 %v235
      %379 = vmatmul.mubr.f32.gmra.mrb[0].mxu0 %v234
      %v380 = vpop.f32.mrb[0].mxu0
      %v381 = vadd.f32 %v307, %v380
      %v382 = vpop.f32.mrb[0].mxu0
      %383 = vdwg.mxu0
      %384 = vmatprep.subr.mxu0 0.0
      %385 = vmatpush1.msra.mxu0 %v270
      %386 = vmatprep.subr.mxu0 0.0
      %387 = vmatpush1.msra.mxu0 %v271
      %388 = vmatprep.subr.mxu0 0.0
      %389 = vmatpush1.msra.mxu0 %v272
      %390 = vmatprep.subr.mxu0 0.0
      %391 = vmatpush1.msra.mxu0 %v273
      %392 = vmatprep.subr.mxu0 0.0
      %393 = vmatpush1.msra.mxu0 %v274
      %394 = vmatprep.subr.mxu0 0.0
      %395 = vmatpush1.msra.mxu0 %v275
      %396 = vmatprep.subr.mxu0 0.0
      %397 = vmatpush1.msra.mxu0 %v276
      %398 = vmatprep.subr.mxu0 0.0
      %399 = vmatpush1.msra.mxu0 %v277
      %400 = vmatprep.subr.mxu0 0.0
      %401 = vmatpush1.msra.mxu0 %v278
      %402 = vmatprep.subr.mxu0 0.0
      %403 = vmatpush1.msra.mxu0 %v279
      %404 = vmatprep.subr.mxu0 0.0
      %405 = vmatpush1.msra.mxu0 %v280
      %406 = vmatprep.subr.mxu0 0.0
      %407 = vmatpush1.msra.mxu0 %v281
      %408 = vmatprep.subr.mxu0 0.0
      %409 = vmatpush1.msra.mxu0 %v282
      %410 = vmatprep.subr.mxu0 0.0
      %411 = vmatpush1.msra.mxu0 %v283
      %412 = vmatprep.subr.mxu0 0.0
      %413 = vmatpush1.msra.mxu0 %v284
      %414 = vmatprep.subr.mxu0 0.0
      %415 = vmatpush1.msra.mxu0 %v285
      %416 = vmatprep.subr.mxu0 0.0
      %417 = vmatpush1.msra.mxu0 %v286
      %418 = vmatprep.subr.mxu0 0.0
      %419 = vmatpush1.msra.mxu0 %v287
      %420 = vmatprep.subr.mxu0 0.0
      %421 = vmatpush1.msra.mxu0 %v288
      %422 = vmatprep.subr.mxu0 0.0
      %423 = vmatpush1.msra.mxu0 %v289
      %424 = vmatprep.subr.mxu0 0.0
      %425 = vmatpush1.msra.mxu0 %v290
      %426 = vmatprep.subr.mxu0 0.0
      %427 = vmatpush1.msra.mxu0 %v291
      %428 = vmatprep.subr.mxu0 0.0
      %429 = vmatpush1.msra.mxu0 %v292
      %430 = vmatprep.subr.mxu0 0.0
      %431 = vmatpush1.msra.mxu0 %v293
      %432 = vmatprep.subr.mxu0 0.0
      %433 = vmatpush1.msra.mxu0 %v294
      %434 = vmatprep.subr.mxu0 0.0
      %435 = vmatpush1.msra.mxu0 %v295
      %436 = vmatprep.subr.mxu0 0.0
      %437 = vmatpush1.msra.mxu0 %v296
      %438 = vmatprep.subr.mxu0 0.0
      %439 = vmatpush1.msra.mxu0 %v297
      %440 = vmatprep.subr.mxu0 0.0
      %441 = vmatpush1.msra.mxu0 %v298
      %442 = vmatprep.subr.mxu0 0.0
      %443 = vmatpush1.msra.mxu0 %v299
      %444 = vmatprep.subr.mxu0 0.0
      %445 = vmatpush1.msra.mxu0 %v300
      %446 = vmatprep.subr.mxu0 0.0
      %447 = vmatpush1.msra.mxu0 %v301
      %448 = vmatprep.mubr.f32.mxu0 %v233
      %449 = vmatmul.mubr.f32.gmra.mrb[0].mxu0 %v232
      %v450 = vpop.f32.mrb[0].mxu0
      %v451 = vadd.f32 %v376, %v450
      %v452 = vpop.f32.mrb[0].mxu0
      %453 = vmatprep.mubr.f32.mxu0 %v237
      %454 = vmatmul.mubr.f32.gmra.mrb[0].mxu0 %v236
      %v455 = vpop.f32.mrb[0].mxu0
      %v456 = vadd.f32 %v381, %v455
      %v457 = vpop.f32.mrb[0].mxu0
      %458 = vdwg.mxu0
      %vm459 = vcmp.eq.s32.totalorder %v33, 0
      %vm460 = vcmp.eq.s32.totalorder %v34, 0
      %v461 = vld [vmem:[#allocation2] sm:$0xff]
      %v462 = vld [vmem:[#allocation2 + $0x8] sm:$0xff]
      %v463 = vsel %vm459, 1, 0
      %v464 = vsel %vm460, 1, 0
      %465 = vset.pattern.permute.xlu0 0
      %466 = vperm.xlu0 %465, %v463
      %v467 = vpop.permute.xlu0 %466
      %468 = vset.pattern.permute.xlu0 0
      %469 = vperm.xlu0 %468, %v464
      %v470 = vpop.permute.xlu0 %469
      %vm471 = vcmp.eq.s32.totalorder %v467, 1
      %vm472 = vcmp.eq.s32.totalorder %v470, 1
      %v473 = vsel %vm471, %v451, %v461
      %v474 = vsel %vm472, %v456, %v462
      %475 = vst [vmem:[#allocation2] sm:$0xff] %v473
      %476 = vst [vmem:[#allocation2 + $0x8] sm:$0xff] %v474
    $region29: #{modular_decoder_forward.1} parent=1 // pred_fallthru
      _
    %s477 = sadd.s32 %s37, 1
    %s478 = sld [smem:[#allocation4 + %s477]]
    %p479 = scmp.gt.s32.totalorder %s478, 0
    // Predicated region
    $region30: #{modular_decoder_forward.1} parent=1 // pred_check
      %p480 = pneg %p479
    $region31: #{modular_decoder_forward.1} parent=1 // pred_check_branch
      %482 = sbr.rel (%p480) target = $region33
    $region32: #{modular_decoder_forward.1} parent=1 // pred_region
      %s483 = scalar_lea.vmem %s3, 32
      %v484 = vld [vmem:[%s483] sm:$0xff]
      %v485 = vld [vmem:[%s483 + $0x8] sm:$0xff]
      %v486 = vld [vmem:[%s483 + $0x10] sm:$0xff]
      %v487 = vld [vmem:[%s483 + $0x18] sm:$0xff]
      %s488 = scalar_lea.vmem %s4, 4
      %v489 = vld [vmem:[%s488] sm:$0xf]
      %v491 = vlaneseq
      %v492 = vshrl.u32 %v491, 7
      %v493 = vsub.s32 0, %v492
      %v494 = vrot.slane %v489, %v493
      %v495 = vlaneseq
      %v496 = vshrl.u32 %v495, 7
      %v497 = vsub.s32 1, %v496
      %v498 = vrot.slane %v489, %v497
      %v499 = vlaneseq
      %v500 = vshrl.u32 %v499, 7
      %v501 = vsub.s32 2, %v500
      %v502 = vrot.slane %v489, %v501
      %v503 = vlaneseq
      %v504 = vshrl.u32 %v503, 7
      %v505 = vsub.s32 3, %v504
      %v506 = vrot.slane %v489, %v505
      %vm511 = vcmask 64512
      %v513 = vsel %vm511, %v31, 0
      %v516 = vsel %vm511, %v32, 0
      %518 = vmatprep.subr.mxu0 %v485
      %519 = vmatpush1.msra.mxu0 %v484
      %520 = vmatprep.subr.mxu0 0.0
      %521 = vmatpush1.msra.mxu0 0.0
      %522 = vmatprep.subr.mxu0 0.0
      %523 = vmatpush1.msra.mxu0 0.0
      %524 = vmatprep.subr.mxu0 0.0
      %525 = vmatpush1.msra.mxu0 0.0
      %526 = vmatprep.subr.mxu0 0.0
      %527 = vmatpush1.msra.mxu0 0.0
      %528 = vmatprep.subr.mxu0 0.0
      %529 = vmatpush1.msra.mxu0 0.0
      %530 = vmatprep.subr.mxu0 0.0
      %531 = vmatpush1.msra.mxu0 0.0
      %532 = vmatprep.subr.mxu0 0.0
      %533 = vmatpush1.msra.mxu0 0.0
      %534 = vmatprep.subr.mxu0 0.0
      %535 = vmatpush1.msra.mxu0 0.0
      %536 = vmatprep.subr.mxu0 0.0
      %537 = vmatpush1.msra.mxu0 0.0
      %538 = vmatprep.subr.mxu0 0.0
      %539 = vmatpush1.msra.mxu0 0.0
      %540 = vmatprep.subr.mxu0 0.0
      %541 = vmatpush1.msra.mxu0 0.0
      %542 = vmatprep.subr.mxu0 0.0
      %543 = vmatpush1.msra.mxu0 0.0
      %544 = vmatprep.subr.mxu0 0.0
      %545 = vmatpush1.msra.mxu0 0.0
      %546 = vmatprep.subr.mxu0 0.0
      %547 = vmatpush1.msra.mxu0 0.0
      %548 = vmatprep.subr.mxu0 0.0
      %549 = vmatpush1.msra.mxu0 0.0
      %550 = vmatprep.subr.mxu0 0.0
      %551 = vmatpush1.msra.mxu0 0.0
      %552 = vmatprep.subr.mxu0 0.0
      %553 = vmatpush1.msra.mxu0 0.0
      %554 = vmatprep.subr.mxu0 0.0
      %555 = vmatpush1.msra.mxu0 0.0
      %556 = vmatprep.subr.mxu0 0.0
      %557 = vmatpush1.msra.mxu0 0.0
      %558 = vmatprep.subr.mxu0 0.0
      %559 = vmatpush1.msra.mxu0 0.0
      %560 = vmatprep.subr.mxu0 0.0
      %561 = vmatpush1.msra.mxu0 0.0
      %562 = vmatprep.subr.mxu0 0.0
      %563 = vmatpush1.msra.mxu0 0.0
      %564 = vmatprep.subr.mxu0 0.0
      %565 = vmatpush1.msra.mxu0 0.0
      %566 = vmatprep.subr.mxu0 0.0
      %567 = vmatpush1.msra.mxu0 0.0
      %568 = vmatprep.subr.mxu0 0.0
      %569 = vmatpush1.msra.mxu0 0.0
      %570 = vmatprep.subr.mxu0 0.0
      %571 = vmatpush1.msra.mxu0 0.0
      %572 = vmatprep.subr.mxu0 0.0
      %573 = vmatpush1.msra.mxu0 0.0
      %574 = vmatprep.subr.mxu0 0.0
      %575 = vmatpush1.msra.mxu0 0.0
      %576 = vmatprep.subr.mxu0 0.0
      %577 = vmatpush1.msra.mxu0 0.0
      %578 = vmatprep.subr.mxu0 0.0
      %579 = vmatpush1.msra.mxu0 0.0
      %580 = vmatprep.subr.mxu0 0.0
      %581 = vmatpush1.msra.mxu0 0.0
      %582 = vmatprep.mubr.f32.mxu0 0.0
      %583 = vmatmul.mubr.f32.gmra.mrb[0].mxu0 %v513
      %v584 = vpop.f32.mrb[0].mxu0
      %v585 = vadd.f32 %v494, %v584
      %v586 = vpop.f32.mrb[0].mxu0
      %v587 = vadd.f32 %v498, %v586
      %588 = vmatprep.mubr.f32.mxu0 0.0
      %589 = vmatmul.mubr.f32.gmra.mrb[0].mxu0 %v516
      %v590 = vpop.f32.mrb[0].mxu0
      %v591 = vadd.f32 %v494, %v590
      %v592 = vpop.f32.mrb[0].mxu0
      %v593 = vadd.f32 %v498, %v592
      %594 = vdwg.mxu0
      %595 = vmatprep.subr.mxu0 %v487
      %596 = vmatpush1.msra.mxu0 %v486
      %597 = vmatprep.subr.mxu0 0.0
      %598 = vmatpush1.msra.mxu0 0.0
      %599 = vmatprep.subr.mxu0 0.0
      %600 = vmatpush1.msra.mxu0 0.0
      %601 = vmatprep.subr.mxu0 0.0
      %602 = vmatpush1.msra.mxu0 0.0
      %603 = vmatprep.subr.mxu0 0.0
      %604 = vmatpush1.msra.mxu0 0.0
      %605 = vmatprep.subr.mxu0 0.0
      %606 = vmatpush1.msra.mxu0 0.0
      %607 = vmatprep.subr.mxu0 0.0
      %608 = vmatpush1.msra.mxu0 0.0
      %609 = vmatprep.subr.mxu0 0.0
      %610 = vmatpush1.msra.mxu0 0.0
      %611 = vmatprep.subr.mxu0 0.0
      %612 = vmatpush1.msra.mxu0 0.0
      %613 = vmatprep.subr.mxu0 0.0
      %614 = vmatpush1.msra.mxu0 0.0
      %615 = vmatprep.subr.mxu0 0.0
      %616 = vmatpush1.msra.mxu0 0.0
      %617 = vmatprep.subr.mxu0 0.0
      %618 = vmatpush1.msra.mxu0 0.0
      %619 = vmatprep.subr.mxu0 0.0
      %620 = vmatpush1.msra.mxu0 0.0
      %621 = vmatprep.subr.mxu0 0.0
      %622 = vmatpush1.msra.mxu0 0.0
      %623 = vmatprep.subr.mxu0 0.0
      %624 = vmatpush1.msra.mxu0 0.0
      %625 = vmatprep.subr.mxu0 0.0
      %626 = vmatpush1.msra.mxu0 0.0
      %627 = vmatprep.subr.mxu0 0.0
      %628 = vmatpush1.msra.mxu0 0.0
      %629 = vmatprep.subr.mxu0 0.0
      %630 = vmatpush1.msra.mxu0 0.0
      %631 = vmatprep.subr.mxu0 0.0
      %632 = vmatpush1.msra.mxu0 0.0
      %633 = vmatprep.subr.mxu0 0.0
      %634 = vmatpush1.msra.mxu0 0.0
      %635 = vmatprep.subr.mxu0 0.0
      %636 = vmatpush1.msra.mxu0 0.0
      %637 = vmatprep.subr.mxu0 0.0
      %638 = vmatpush1.msra.mxu0 0.0
      %639 = vmatprep.subr.mxu0 0.0
      %640 = vmatpush1.msra.mxu0 0.0
      %641 = vmatprep.subr.mxu0 0.0
      %642 = vmatpush1.msra.mxu0 0.0
      %643 = vmatprep.subr.mxu0 0.0
      %644 = vmatpush1.msra.mxu0 0.0
      %645 = vmatprep.subr.mxu0 0.0
      %646 = vmatpush1.msra.mxu0 0.0
      %647 = vmatprep.subr.mxu0 0.0
      %648 = vmatpush1.msra.mxu0 0.0
      %649 = vmatprep.subr.mxu0 0.0
      %650 = vmatpush1.msra.mxu0 0.0
      %651 = vmatprep.subr.mxu0 0.0
      %652 = vmatpush1.msra.mxu0 0.0
      %653 = vmatprep.subr.mxu0 0.0
      %654 = vmatpush1.msra.mxu0 0.0
      %655 = vmatprep.subr.mxu0 0.0
      %656 = vmatpush1.msra.mxu0 0.0
      %657 = vmatprep.subr.mxu0 0.0
      %658 = vmatpush1.msra.mxu0 0.0
      %659 = vmatprep.mubr.f32.mxu0 0.0
      %660 = vmatmul.mubr.f32.gmra.mrb[0].mxu0 %v513
      %v661 = vpop.f32.mrb[0].mxu0
      %v662 = vadd.f32 %v502, %v661
      %v663 = vpop.f32.mrb[0].mxu0
      %v664 = vadd.f32 %v506, %v663
      %665 = vmatprep.mubr.f32.mxu0 0.0
      %666 = vmatmul.mubr.f32.gmra.mrb[0].mxu0 %v516
      %v667 = vpop.f32.mrb[0].mxu0
      %v668 = vadd.f32 %v502, %v667
      %v669 = vpop.f32.mrb[0].mxu0
      %v670 = vadd.f32 %v506, %v669
      %671 = vdwg.mxu0
      %v672 = vmax.f32 %v585, 0.0
      %v673 = vmax.f32 %v587, 0.0
      %v674 = vmax.f32 %v662, 0.0
      %v675 = vmax.f32 %v664, 0.0
      %v676 = vmax.f32 %v591, 0.0
      %v677 = vmax.f32 %v593, 0.0
      %v678 = vmax.f32 %v668, 0.0
      %v679 = vmax.f32 %v670, 0.0
      %s680 = scalar_lea.vmem %s5, 512
      %v681 = vld [vmem:[%s680] sm:$0xff]
      %v682 = vld [vmem:[%s680 + $0x8] sm:$0xff]
      %v683 = vld [vmem:[%s680 + $0x10] sm:$0xff]
      %v684 = vld [vmem:[%s680 + $0x18] sm:$0xff]
      %v685 = vld [vmem:[%s680 + $0x20] sm:$0xff]
      %v686 = vld [vmem:[%s680 + $0x28] sm:$0xff]
      %v687 = vld [vmem:[%s680 + $0x30] sm:$0xff]
      %v688 = vld [vmem:[%s680 + $0x38] sm:$0xff]
      %v689 = vld [vmem:[%s680 + $0x40] sm:$0xff]
      %v690 = vld [vmem:[%s680 + $0x48] sm:$0xff]
      %v691 = vld [vmem:[%s680 + $0x50] sm:$0xff]
      %v692 = vld [vmem:[%s680 + $0x58] sm:$0xff]
      %v693 = vld [vmem:[%s680 + $0x60] sm:$0xff]
      %v694 = vld [vmem:[%s680 + $0x68] sm:$0xff]
      %v695 = vld [vmem:[%s680 + $0x70] sm:$0xff]
      %v696 = vld [vmem:[%s680 + $0x78] sm:$0xff]
      %v697 = vld [vmem:[%s680 + $0x80] sm:$0xff]
      %v698 = vld [vmem:[%s680 + $0x88] sm:$0xff]
      %v699 = vld [vmem:[%s680 + $0x90] sm:$0xff]
      %v700 = vld [vmem:[%s680 + $0x98] sm:$0xff]
      %v701 = vld [vmem:[%s680 + $0xa0] sm:$0xff]
      %v702 = vld [vmem:[%s680 + $0xa8] sm:$0xff]
      %v703 = vld [vmem:[%s680 + $0xb0] sm:$0xff]
      %v704 = vld [vmem:[%s680 + $0xb8] sm:$0xff]
      %v705 = vld [vmem:[%s680 + $0xc0] sm:$0xff]
      %v706 = vld [vmem:[%s680 + $0xc8] sm:$0xff]
      %v707 = vld [vmem:[%s680 + $0xd0] sm:$0xff]
      %v708 = vld [vmem:[%s680 + $0xd8] sm:$0xff]
      %v709 = vld [vmem:[%s680 + $0xe0] sm:$0xff]
      %v710 = vld [vmem:[%s680 + $0xe8] sm:$0xff]
      %v711 = vld [vmem:[%s680 + $0xf0] sm:$0xff]
      %v712 = vld [vmem:[%s680 + $0xf8] sm:$0xff]
      %v713 = vld [vmem:[%s680 + $0x100] sm:$0xff]
      %v714 = vld [vmem:[%s680 + $0x108] sm:$0xff]
      %v715 = vld [vmem:[%s680 + $0x110] sm:$0xff]
      %v716 = vld [vmem:[%s680 + $0x118] sm:$0xff]
      %v717 = vld [vmem:[%s680 + $0x120] sm:$0xff]
      %v718 = vld [vmem:[%s680 + $0x128] sm:$0xff]
      %v719 = vld [vmem:[%s680 + $0x130] sm:$0xff]
      %v720 = vld [vmem:[%s680 + $0x138] sm:$0xff]
      %v721 = vld [vmem:[%s680 + $0x140] sm:$0xff]
      %v722 = vld [vmem:[%s680 + $0x148] sm:$0xff]
      %v723 = vld [vmem:[%s680 + $0x150] sm:$0xff]
      %v724 = vld [vmem:[%s680 + $0x158] sm:$0xff]
      %v725 = vld [vmem:[%s680 + $0x160] sm:$0xff]
      %v726 = vld [vmem:[%s680 + $0x168] sm:$0xff]
      %v727 = vld [vmem:[%s680 + $0x170] sm:$0xff]
      %v728 = vld [vmem:[%s680 + $0x178] sm:$0xff]
      %v729 = vld [vmem:[%s680 + $0x180] sm:$0xff]
      %v730 = vld [vmem:[%s680 + $0x188] sm:$0xff]
      %v731 = vld [vmem:[%s680 + $0x190] sm:$0xff]
      %v732 = vld [vmem:[%s680 + $0x198] sm:$0xff]
      %v733 = vld [vmem:[%s680 + $0x1a0] sm:$0xff]
      %v734 = vld [vmem:[%s680 + $0x1a8] sm:$0xff]
      %v735 = vld [vmem:[%s680 + $0x1b0] sm:$0xff]
      %v736 = vld [vmem:[%s680 + $0x1b8] sm:$0xff]
      %v737 = vld [vmem:[%s680 + $0x1c0] sm:$0xff]
      %v738 = vld [vmem:[%s680 + $0x1c8] sm:$0xff]
      %v739 = vld [vmem:[%s680 + $0x1d0] sm:$0xff]
      %v740 = vld [vmem:[%s680 + $0x1d8] sm:$0xff]
      %v741 = vld [vmem:[%s680 + $0x1e0] sm:$0xff]
      %v742 = vld [vmem:[%s680 + $0x1e8] sm:$0xff]
      %v743 = vld [vmem:[%s680 + $0x1f0] sm:$0xff]
      %v744 = vld [vmem:[%s680 + $0x1f8] sm:$0xff]
      %s745 = scalar_lea.vmem %s6, 1
      %v746 = vld [vmem:[%s745] sm:$0x1]
      %v748 = vlaneseq
      %v749 = vshrl.u32 %v748, 7
      %v750 = vsub.s32 0, %v749
      %v751 = vrot.slane %v746, %v750
      %753 = vmatprep.subr.mxu0 0.0
      %754 = vmatpush1.msra.mxu0 %v681
      %755 = vmatprep.subr.mxu0 0.0
      %756 = vmatpush1.msra.mxu0 %v682
      %757 = vmatprep.subr.mxu0 0.0
      %758 = vmatpush1.msra.mxu0 %v683
      %759 = vmatprep.subr.mxu0 0.0
      %760 = vmatpush1.msra.mxu0 %v684
      %761 = vmatprep.subr.mxu0 0.0
      %762 = vmatpush1.msra.mxu0 %v685
      %763 = vmatprep.subr.mxu0 0.0
      %764 = vmatpush1.msra.mxu0 %v686
      %765 = vmatprep.subr.mxu0 0.0
      %766 = vmatpush1.msra.mxu0 %v687
      %767 = vmatprep.subr.mxu0 0.0
      %768 = vmatpush1.msra.mxu0 %v688
      %769 = vmatprep.subr.mxu0 0.0
      %770 = vmatpush1.msra.mxu0 %v689
      %771 = vmatprep.subr.mxu0 0.0
      %772 = vmatpush1.msra.mxu0 %v690
      %773 = vmatprep.subr.mxu0 0.0
      %774 = vmatpush1.msra.mxu0 %v691
      %775 = vmatprep.subr.mxu0 0.0
      %776 = vmatpush1.msra.mxu0 %v692
      %777 = vmatprep.subr.mxu0 0.0
      %778 = vmatpush1.msra.mxu0 %v693
      %779 = vmatprep.subr.mxu0 0.0
      %780 = vmatpush1.msra.mxu0 %v694
      %781 = vmatprep.subr.mxu0 0.0
      %782 = vmatpush1.msra.mxu0 %v695
      %783 = vmatprep.subr.mxu0 0.0
      %784 = vmatpush1.msra.mxu0 %v696
      %785 = vmatprep.subr.mxu0 0.0
      %786 = vmatpush1.msra.mxu0 %v697
      %787 = vmatprep.subr.mxu0 0.0
      %788 = vmatpush1.msra.mxu0 %v698
      %789 = vmatprep.subr.mxu0 0.0
      %790 = vmatpush1.msra.mxu0 %v699
      %791 = vmatprep.subr.mxu0 0.0
      %792 = vmatpush1.msra.mxu0 %v700
      %793 = vmatprep.subr.mxu0 0.0
      %794 = vmatpush1.msra.mxu0 %v701
      %795 = vmatprep.subr.mxu0 0.0
      %796 = vmatpush1.msra.mxu0 %v702
      %797 = vmatprep.subr.mxu0 0.0
      %798 = vmatpush1.msra.mxu0 %v703
      %799 = vmatprep.subr.mxu0 0.0
      %800 = vmatpush1.msra.mxu0 %v704
      %801 = vmatprep.subr.mxu0 0.0
      %802 = vmatpush1.msra.mxu0 %v705
      %803 = vmatprep.subr.mxu0 0.0
      %804 = vmatpush1.msra.mxu0 %v706
      %805 = vmatprep.subr.mxu0 0.0
      %806 = vmatpush1.msra.mxu0 %v707
      %807 = vmatprep.subr.mxu0 0.0
      %808 = vmatpush1.msra.mxu0 %v708
      %809 = vmatprep.subr.mxu0 0.0
      %810 = vmatpush1.msra.mxu0 %v709
      %811 = vmatprep.subr.mxu0 0.0
      %812 = vmatpush1.msra.mxu0 %v710
      %813 = vmatprep.subr.mxu0 0.0
      %814 = vmatpush1.msra.mxu0 %v711
      %815 = vmatprep.subr.mxu0 0.0
      %816 = vmatpush1.msra.mxu0 %v712
      %817 = vmatprep.mubr.f32.mxu0 %v673
      %818 = vmatmul.mubr.f32.gmra.mrb[0].mxu0 %v672
      %v819 = vpop.f32.mrb[0].mxu0
      %v820 = vadd.f32 %v751, %v819
      %v821 = vpop.f32.mrb[0].mxu0
      %822 = vmatprep.mubr.f32.mxu0 %v677
      %823 = vmatmul.mubr.f32.gmra.mrb[0].mxu0 %v676
      %v824 = vpop.f32.mrb[0].mxu0
      %v825 = vadd.f32 %v751, %v824
      %v826 = vpop.f32.mrb[0].mxu0
      %827 = vdwg.mxu0
      %828 = vmatprep.subr.mxu0 0.0
      %829 = vmatpush1.msra.mxu0 %v713
      %830 = vmatprep.subr.mxu0 0.0
      %831 = vmatpush1.msra.mxu0 %v714
      %832 = vmatprep.subr.mxu0 0.0
      %833 = vmatpush1.msra.mxu0 %v715
      %834 = vmatprep.subr.mxu0 0.0
      %835 = vmatpush1.msra.mxu0 %v716
      %836 = vmatprep.subr.mxu0 0.0
      %837 = vmatpush1.msra.mxu0 %v717
      %838 = vmatprep.subr.mxu0 0.0
      %839 = vmatpush1.msra.mxu0 %v718
      %840 = vmatprep.subr.mxu0 0.0
      %841 = vmatpush1.msra.mxu0 %v719
      %842 = vmatprep.subr.mxu0 0.0
      %843 = vmatpush1.msra.mxu0 %v720
      %844 = vmatprep.subr.mxu0 0.0
      %845 = vmatpush1.msra.mxu0 %v721
      %846 = vmatprep.subr.mxu0 0.0
      %847 = vmatpush1.msra.mxu0 %v722
      %848 = vmatprep.subr.mxu0 0.0
      %849 = vmatpush1.msra.mxu0 %v723
      %850 = vmatprep.subr.mxu0 0.0
      %851 = vmatpush1.msra.mxu0 %v724
      %852 = vmatprep.subr.mxu0 0.0
      %853 = vmatpush1.msra.mxu0 %v725
      %854 = vmatprep.subr.mxu0 0.0
      %855 = vmatpush1.msra.mxu0 %v726
      %856 = vmatprep.subr.mxu0 0.0
      %857 = vmatpush1.msra.mxu0 %v727
      %858 = vmatprep.subr.mxu0 0.0
      %859 = vmatpush1.msra.mxu0 %v728
      %860 = vmatprep.subr.mxu0 0.0
      %861 = vmatpush1.msra.mxu0 %v729
      %862 = vmatprep.subr.mxu0 0.0
      %863 = vmatpush1.msra.mxu0 %v730
      %864 = vmatprep.subr.mxu0 0.0
      %865 = vmatpush1.msra.mxu0 %v731
      %866 = vmatprep.subr.mxu0 0.0
      %867 = vmatpush1.msra.mxu0 %v732
      %868 = vmatprep.subr.mxu0 0.0
      %869 = vmatpush1.msra.mxu0 %v733
      %870 = vmatprep.subr.mxu0 0.0
      %871 = vmatpush1.msra.mxu0 %v734
      %872 = vmatprep.subr.mxu0 0.0
      %873 = vmatpush1.msra.mxu0 %v735
      %874 = vmatprep.subr.mxu0 0.0
      %875 = vmatpush1.msra.mxu0 %v736
      %876 = vmatprep.subr.mxu0 0.0
      %877 = vmatpush1.msra.mxu0 %v737
      %878 = vmatprep.subr.mxu0 0.0
      %879 = vmatpush1.msra.mxu0 %v738
      %880 = vmatprep.subr.mxu0 0.0
      %881 = vmatpush1.msra.mxu0 %v739
      %882 = vmatprep.subr.mxu0 0.0
      %883 = vmatpush1.msra.mxu0 %v740
      %884 = vmatprep.subr.mxu0 0.0
      %885 = vmatpush1.msra.mxu0 %v741
      %886 = vmatprep.subr.mxu0 0.0
      %887 = vmatpush1.msra.mxu0 %v742
      %888 = vmatprep.subr.mxu0 0.0
      %889 = vmatpush1.msra.mxu0 %v743
      %890 = vmatprep.subr.mxu0 0.0
      %891 = vmatpush1.msra.mxu0 %v744
      %892 = vmatprep.mubr.f32.mxu0 %v675
      %893 = vmatmul.mubr.f32.gmra.mrb[0].mxu0 %v674
      %v894 = vpop.f32.mrb[0].mxu0
      %v895 = vadd.f32 %v820, %v894
      %v896 = vpop.f32.mrb[0].mxu0
      %897 = vmatprep.mubr.f32.mxu0 %v679
      %898 = vmatmul.mubr.f32.gmra.mrb[0].mxu0 %v678
      %v899 = vpop.f32.mrb[0].mxu0
      %v900 = vadd.f32 %v825, %v899
      %v901 = vpop.f32.mrb[0].mxu0
      %902 = vdwg.mxu0
      %vm903 = vcmp.eq.s32.totalorder %v33, 1
      %vm904 = vcmp.eq.s32.totalorder %v34, 1
      %v905 = vld [vmem:[#allocation2] sm:$0xff]
      %v906 = vld [vmem:[#allocation2 + $0x8] sm:$0xff]
      %v907 = vsel %vm903, 1, 0
      %v908 = vsel %vm904, 1, 0
      %909 = vset.pattern.permute.xlu0 0
      %910 = vperm.xlu0 %909, %v907
      %v911 = vpop.permute.xlu0 %910
      %912 = vset.pattern.permute.xlu0 0
      %913 = vperm.xlu0 %912, %v908
      %v914 = vpop.permute.xlu0 %913
      %vm915 = vcmp.eq.s32.totalorder %v911, 1
      %vm916 = vcmp.eq.s32.totalorder %v914, 1
      %v917 = vsel %vm915, %v895, %v905
      %v918 = vsel %vm916, %v900, %v906
      %919 = vst [vmem:[#allocation2] sm:$0xff] %v917
      %920 = vst [vmem:[#allocation2 + $0x8] sm:$0xff] %v918
    $region33: #{modular_decoder_forward.1} parent=1 // pred_fallthru
      _
    %s921 = sadd.s32 %s37, 2
    %s922 = sld [smem:[#allocation4 + %s921]]
    %p923 = scmp.gt.s32.totalorder %s922, 0
    // Predicated region
    $region34: #{modular_decoder_forward.1} parent=1 // pred_check
      %p924 = pneg %p923
    $region35: #{modular_decoder_forward.1} parent=1 // pred_check_branch
      %926 = sbr.rel (%p924) target = $region37
    $region36: #{modular_decoder_forward.1} parent=1 // pred_region
      %s927 = scalar_lea.vmem %s3, 64
      %v928 = vld [vmem:[%s927] sm:$0xff]
      %v929 = vld [vmem:[%s927 + $0x8] sm:$0xff]
      %v930 = vld [vmem:[%s927 + $0x10] sm:$0xff]
      %v931 = vld [vmem:[%s927 + $0x18] sm:$0xff]
      %s932 = scalar_lea.vmem %s4, 8
      %v933 = vld [vmem:[%s932] sm:$0xf]
      %v935 = vlaneseq
      %v936 = vshrl.u32 %v935, 7
      %v937 = vsub.s32 0, %v936
      %v938 = vrot.slane %v933, %v937
      %v939 = vlaneseq
      %v940 = vshrl.u32 %v939, 7
      %v941 = vsub.s32 1, %v940
      %v942 = vrot.slane %v933, %v941
      %v943 = vlaneseq
      %v944 = vshrl.u32 %v943, 7
      %v945 = vsub.s32 2, %v944
      %v946 = vrot.slane %v933, %v945
      %v947 = vlaneseq
      %v948 = vshrl.u32 %v947, 7
      %v949 = vsub.s32 3, %v948
      %v950 = vrot.slane %v933, %v949
      %vm955 = vcmask 64512
      %v957 = vsel %vm955, %v31, 0
      %v960 = vsel %vm955, %v32, 0
      %962 = vmatprep.subr.mxu0 %v929
      %963 = vmatpush1.msra.mxu0 %v928
      %964 = vmatprep.subr.mxu0 0.0
      %965 = vmatpush1.msra.mxu0 0.0
      %966 = vmatprep.subr.mxu0 0.0
      %967 = vmatpush1.msra.mxu0 0.0
      %968 = vmatprep.subr.mxu0 0.0
      %969 = vmatpush1.msra.mxu0 0.0
      %970 = vmatprep.subr.mxu0 0.0
      %971 = vmatpush1.msra.mxu0 0.0
      %972 = vmatprep.subr.mxu0 0.0
      %973 = vmatpush1.msra.mxu0 0.0
      %974 = vmatprep.subr.mxu0 0.0
      %975 = vmatpush1.msra.mxu0 0.0
      %976 = vmatprep.subr.mxu0 0.0
      %977 = vmatpush1.msra.mxu0 0.0
      %978 = vmatprep.subr.mxu0 0.0
      %979 = vmatpush1.msra.mxu0 0.0
      %980 = vmatprep.subr.mxu0 0.0
      %981 = vmatpush1.msra.mxu0 0.0
      %982 = vmatprep.subr.mxu0 0.0
      %983 = vmatpush1.msra.mxu0 0.0
      %984 = vmatprep.subr.mxu0 0.0
      %985 = vmatpush1.msra.mxu0 0.0
      %986 = vmatprep.subr.mxu0 0.0
      %987 = vmatpush1.msra.mxu0 0.0
      %988 = vmatprep.subr.mxu0 0.0
      %989 = vmatpush1.msra.mxu0 0.0
      %990 = vmatprep.subr.mxu0 0.0
      %991 = vmatpush1.msra.mxu0 0.0
      %992 = vmatprep.subr.mxu0 0.0
      %993 = vmatpush1.msra.mxu0 0.0
      %994 = vmatprep.subr.mxu0 0.0
      %995 = vmatpush1.msra.mxu0 0.0
      %996 = vmatprep.subr.mxu0 0.0
      %997 = vmatpush1.msra.mxu0 0.0
      %998 = vmatprep.subr.mxu0 0.0
      %999 = vmatpush1.msra.mxu0 0.0
      %1000 = vmatprep.subr.mxu0 0.0
      %1001 = vmatpush1.msra.mxu0 0.0
      %1002 = vmatprep.subr.mxu0 0.0
      %1003 = vmatpush1.msra.mxu0 0.0
      %1004 = vmatprep.subr.mxu0 0.0
      %1005 = vmatpush1.msra.mxu0 0.0
      %1006 = vmatprep.subr.mxu0 0.0
      %1007 = vmatpush1.msra.mxu0 0.0
      %1008 = vmatprep.subr.mxu0 0.0
      %1009 = vmatpush1.msra.mxu0 0.0
      %1010 = vmatprep.subr.mxu0 0.0
      %1011 = vmatpush1.msra.mxu0 0.0
      %1012 = vmatprep.subr.mxu0 0.0
      %1013 = vmatpush1.msra.mxu0 0.0
      %1014 = vmatprep.subr.mxu0 0.0
      %1015 = vmatpush1.msra.mxu0 0.0
      %1016 = vmatprep.subr.mxu0 0.0
      %1017 = vmatpush1.msra.mxu0 0.0
      %1018 = vmatprep.subr.mxu0 0.0
      %1019 = vmatpush1.msra.mxu0 0.0
      %1020 = vmatprep.subr.mxu0 0.0
      %1021 = vmatpush1.msra.mxu0 0.0
      %1022 = vmatprep.subr.mxu0 0.0
      %1023 = vmatpush1.msra.mxu0 0.0
      %1024 = vmatprep.subr.mxu0 0.0
      %1025 = vmatpush1.msra.mxu0 0.0
      %1026 = vmatprep.mubr.f32.mxu0 0.0
      %1027 = vmatmul.mubr.f32.gmra.mrb[0].mxu0 %v957
      %v1028 = vpop.f32.mrb[0].mxu0
      %v1029 = vadd.f32 %v938, %v1028
      %v1030 = vpop.f32.mrb[0].mxu0
      %v1031 = vadd.f32 %v942, %v1030
      %1032 = vmatprep.mubr.f32.mxu0 0.0
      %1033 = vmatmul.mubr.f32.gmra.mrb[0].mxu0 %v960
      %v1034 = vpop.f32.mrb[0].mxu0
      %v1035 = vadd.f32 %v938, %v1034
      %v1036 = vpop.f32.mrb[0].mxu0
      %v1037 = vadd.f32 %v942, %v1036
      %1038 = vdwg.mxu0
      %1039 = vmatprep.subr.mxu0 %v931
      %1040 = vmatpush1.msra.mxu0 %v930
      %1041 = vmatprep.subr.mxu0 0.0
      %1042 = vmatpush1.msra.mxu0 0.0
      %1043 = vmatprep.subr.mxu0 0.0
      %1044 = vmatpush1.msra.mxu0 0.0
      %1045 = vmatprep.subr.mxu0 0.0
      %1046 = vmatpush1.msra.mxu0 0.0
      %1047 = vmatprep.subr.mxu0 0.0
      %1048 = vmatpush1.msra.mxu0 0.0
      %1049 = vmatprep.subr.mxu0 0.0
      %1050 = vmatpush1.msra.mxu0 0.0
      %1051 = vmatprep.subr.mxu0 0.0
      %1052 = vmatpush1.msra.mxu0 0.0
      %1053 = vmatprep.subr.mxu0 0.0
      %1054 = vmatpush1.msra.mxu0 0.0
      %1055 = vmatprep.subr.mxu0 0.0
      %1056 = vmatpush1.msra.mxu0 0.0
      %1057 = vmatprep.subr.mxu0 0.0
      %1058 = vmatpush1.msra.mxu0 0.0
      %1059 = vmatprep.subr.mxu0 0.0
      %1060 = vmatpush1.msra.mxu0 0.0
      %1061 = vmatprep.subr.mxu0 0.0
      %1062 = vmatpush1.msra.mxu0 0.0
      %1063 = vmatprep.subr.mxu0 0.0
      %1064 = vmatpush1.msra.mxu0 0.0
      %1065 = vmatprep.subr.mxu0 0.0
      %1066 = vmatpush1.msra.mxu0 0.0
      %1067 = vmatprep.subr.mxu0 0.0
      %1068 = vmatpush1.msra.mxu0 0.0
      %1069 = vmatprep.subr.mxu0 0.0
      %1070 = vmatpush1.msra.mxu0 0.0
      %1071 = vmatprep.subr.mxu0 0.0
      %1072 = vmatpush1.msra.mxu0 0.0
      %1073 = vmatprep.subr.mxu0 0.0
      %1074 = vmatpush1.msra.mxu0 0.0
      %1075 = vmatprep.subr.mxu0 0.0
      %1076 = vmatpush1.msra.mxu0 0.0
      %1077 = vmatprep.subr.mxu0 0.0
      %1078 = vmatpush1.msra.mxu0 0.0
      %1079 = vmatprep.subr.mxu0 0.0
      %1080 = vmatpush1.msra.mxu0 0.0
      %1081 = vmatprep.subr.mxu0 0.0
      %1082 = vmatpush1.msra.mxu0 0.0
      %1083 = vmatprep.subr.mxu0 0.0
      %1084 = vmatpush1.msra.mxu0 0.0
      %1085 = vmatprep.subr.mxu0 0.0
      %1086 = vmatpush1.msra.mxu0 0.0
      %1087 = vmatprep.subr.mxu0 0.0
      %1088 = vmatpush1.msra.mxu0 0.0
      %1089 = vmatprep.subr.mxu0 0.0
      %1090 = vmatpush1.msra.mxu0 0.0
      %1091 = vmatprep.subr.mxu0 0.0
      %1092 = vmatpush1.msra.mxu0 0.0
      %1093 = vmatprep.subr.mxu0 0.0
      %1094 = vmatpush1.msra.mxu0 0.0
      %1095 = vmatprep.subr.mxu0 0.0
      %1096 = vmatpush1.msra.mxu0 0.0
      %1097 = vmatprep.subr.mxu0 0.0
      %1098 = vmatpush1.msra.mxu0 0.0
      %1099 = vmatprep.subr.mxu0 0.0
      %1100 = vmatpush1.msra.mxu0 0.0
      %1101 = vmatprep.subr.mxu0 0.0
      %1102 = vmatpush1.msra.mxu0 0.0
      %1103 = vmatprep.mubr.f32.mxu0 0.0
      %1104 = vmatmul.mubr.f32.gmra.mrb[0].mxu0 %v957
      %v1105 = vpop.f32.mrb[0].mxu0
      %v1106 = vadd.f32 %v946, %v1105
      %v1107 = vpop.f32.mrb[0].mxu0
      %v1108 = vadd.f32 %v950, %v1107
      %1109 = vmatprep.mubr.f32.mxu0 0.0
      %1110 = vmatmul.mubr.f32.gmra.mrb[0].mxu0 %v960
      %v1111 = vpop.f32.mrb[0].mxu0
      %v1112 = vadd.f32 %v946, %v1111
      %v1113 = vpop.f32.mrb[0].mxu0
      %v1114 = vadd.f32 %v950, %v1113
      %1115 = vdwg.mxu0
      %v1116 = vmax.f32 %v1029, 0.0
      %v1117 = vmax.f32 %v1031, 0.0
      %v1118 = vmax.f32 %v1106, 0.0
      %v1119 = vmax.f32 %v1108, 0.0
      %v1120 = vmax.f32 %v1035, 0.0
      %v1121 = vmax.f32 %v1037, 0.0
      %v1122 = vmax.f32 %v1112, 0.0
      %v1123 = vmax.f32 %v1114, 0.0
      %s1124 = scalar_lea.vmem %s5, 1024
      %v1125 = vld [vmem:[%s1124] sm:$0xff]
      %v1126 = vld [vmem:[%s1124 + $0x8] sm:$0xff]
      %v1127 = vld [vmem:[%s1124 + $0x10] sm:$0xff]
      %v1128 = vld [vmem:[%s1124 + $0x18] sm:$0xff]
      %v1129 = vld [vmem:[%s1124 + $0x20] sm:$0xff]
      %v1130 = vld [vmem:[%s1124 + $0x28] sm:$0xff]
      %v1131 = vld [vmem:[%s1124 + $0x30] sm:$0xff]
      %v1132 = vld [vmem:[%s1124 + $0x38] sm:$0xff]
      %v1133 = vld [vmem:[%s1124 + $0x40] sm:$0xff]
      %v1134 = vld [vmem:[%s1124 + $0x48] sm:$0xff]
      %v1135 = vld [vmem:[%s1124 + $0x50] sm:$0xff]
      %v1136 = vld [vmem:[%s1124 + $0x58] sm:$0xff]
      %v1137 = vld [vmem:[%s1124 + $0x60] sm:$0xff]
      %v1138 = vld [vmem:[%s1124 + $0x68] sm:$0xff]
      %v1139 = vld [vmem:[%s1124 + $0x70] sm:$0xff]
      %v1140 = vld [vmem:[%s1124 + $0x78] sm:$0xff]
      %v1141 = vld [vmem:[%s1124 + $0x80] sm:$0xff]
      %v1142 = vld [vmem:[%s1124 + $0x88] sm:$0xff]
      %v1143 = vld [vmem:[%s1124 + $0x90] sm:$0xff]
      %v1144 = vld [vmem:[%s1124 + $0x98] sm:$0xff]
      %v1145 = vld [vmem:[%s1124 + $0xa0] sm:$0xff]
      %v1146 = vld [vmem:[%s1124 + $0xa8] sm:$0xff]
      %v1147 = vld [vmem:[%s1124 + $0xb0] sm:$0xff]
      %v1148 = vld [vmem:[%s1124 + $0xb8] sm:$0xff]
      %v1149 = vld [vmem:[%s1124 + $0xc0] sm:$0xff]
      %v1150 = vld [vmem:[%s1124 + $0xc8] sm:$0xff]
      %v1151 = vld [vmem:[%s1124 + $0xd0] sm:$0xff]
      %v1152 = vld [vmem:[%s1124 + $0xd8] sm:$0xff]
      %v1153 = vld [vmem:[%s1124 + $0xe0] sm:$0xff]
      %v1154 = vld [vmem:[%s1124 + $0xe8] sm:$0xff]
      %v1155 = vld [vmem:[%s1124 + $0xf0] sm:$0xff]
      %v1156 = vld [vmem:[%s1124 + $0xf8] sm:$0xff]
      %v1157 = vld [vmem:[%s1124 + $0x100] sm:$0xff]
      %v1158 = vld [vmem:[%s1124 + $0x108] sm:$0xff]
      %v1159 = vld [vmem:[%s1124 + $0x110] sm:$0xff]
      %v1160 = vld [vmem:[%s1124 + $0x118] sm:$0xff]
      %v1161 = vld [vmem:[%s1124 + $0x120] sm:$0xff]
      %v1162 = vld [vmem:[%s1124 + $0x128] sm:$0xff]
      %v1163 = vld [vmem:[%s1124 + $0x130] sm:$0xff]
      %v1164 = vld [vmem:[%s1124 + $0x138] sm:$0xff]
      %v1165 = vld [vmem:[%s1124 + $0x140] sm:$0xff]
      %v1166 = vld [vmem:[%s1124 + $0x148] sm:$0xff]
      %v1167 = vld [vmem:[%s1124 + $0x150] sm:$0xff]
      %v1168 = vld [vmem:[%s1124 + $0x158] sm:$0xff]
      %v1169 = vld [vmem:[%s1124 + $0x160] sm:$0xff]
      %v1170 = vld [vmem:[%s1124 + $0x168] sm:$0xff]
      %v1171 = vld [vmem:[%s1124 + $0x170] sm:$0xff]
      %v1172 = vld [vmem:[%s1124 + $0x178] sm:$0xff]
      %v1173 = vld [vmem:[%s1124 + $0x180] sm:$0xff]
      %v1174 = vld [vmem:[%s1124 + $0x188] sm:$0xff]
      %v1175 = vld [vmem:[%s1124 + $0x190] sm:$0xff]
      %v1176 = vld [vmem:[%s1124 + $0x198] sm:$0xff]
      %v1177 = vld [vmem:[%s1124 + $0x1a0] sm:$0xff]
      %v1178 = vld [vmem:[%s1124 + $0x1a8] sm:$0xff]
      %v1179 = vld [vmem:[%s1124 + $0x1b0] sm:$0xff]
      %v1180 = vld [vmem:[%s1124 + $0x1b8] sm:$0xff]
      %v1181 = vld [vmem:[%s1124 + $0x1c0] sm:$0xff]
      %v1182 = vld [vmem:[%s1124 + $0x1c8] sm:$0xff]
      %v1183 = vld [vmem:[%s1124 + $0x1d0] sm:$0xff]
      %v1184 = vld [vmem:[%s1124 + $0x1d8] sm:$0xff]
      %v1185 = vld [vmem:[%s1124 + $0x1e0] sm:$0xff]
      %v1186 = vld [vmem:[%s1124 + $0x1e8] sm:$0xff]
      %v1187 = vld [vmem:[%s1124 + $0x1f0] sm:$0xff]
      %v1188 = vld [vmem:[%s1124 + $0x1f8] sm:$0xff]
      %s1189 = scalar_lea.vmem %s6, 2
      %v1190 = vld [vmem:[%s1189] sm:$0x1]
      %v1192 = vlaneseq
      %v1193 = vshrl.u32 %v1192, 7
      %v1194 = vsub.s32 0, %v1193
      %v1195 = vrot.slane %v1190, %v1194
      %1197 = vmatprep.subr.mxu0 0.0
      %1198 = vmatpush1.msra.mxu0 %v1125
      %1199 = vmatprep.subr.mxu0 0.0
      %1200 = vmatpush1.msra.mxu0 %v1126
      %1201 = vmatprep.subr.mxu0 0.0
      %1202 = vmatpush1.msra.mxu0 %v1127
      %1203 = vmatprep.subr.mxu0 0.0
      %1204 = vmatpush1.msra.mxu0 %v1128
      %1205 = vmatprep.subr.mxu0 0.0
      %1206 = vmatpush1.msra.mxu0 %v1129
      %1207 = vmatprep.subr.mxu0 0.0
      %1208 = vmatpush1.msra.mxu0 %v1130
      %1209 = vmatprep.subr.mxu0 0.0
      %1210 = vmatpush1.msra.mxu0 %v1131
      %1211 = vmatprep.subr.mxu0 0.0
      %1212 = vmatpush1.msra.mxu0 %v1132
      %1213 = vmatprep.subr.mxu0 0.0
      %1214 = vmatpush1.msra.mxu0 %v1133
      %1215 = vmatprep.subr.mxu0 0.0
      %1216 = vmatpush1.msra.mxu0 %v1134
      %1217 = vmatprep.subr.mxu0 0.0
      %1218 = vmatpush1.msra.mxu0 %v1135
      %1219 = vmatprep.subr.mxu0 0.0
      %1220 = vmatpush1.msra.mxu0 %v1136
      %1221 = vmatprep.subr.mxu0 0.0
      %1222 = vmatpush1.msra.mxu0 %v1137
      %1223 = vmatprep.subr.mxu0 0.0
      %1224 = vmatpush1.msra.mxu0 %v1138
      %1225 = vmatprep.subr.mxu0 0.0
      %1226 = vmatpush1.msra.mxu0 %v1139
      %1227 = vmatprep.subr.mxu0 0.0
      %1228 = vmatpush1.msra.mxu0 %v1140
      %1229 = vmatprep.subr.mxu0 0.0
      %1230 = vmatpush1.msra.mxu0 %v1141
      %1231 = vmatprep.subr.mxu0 0.0
      %1232 = vmatpush1.msra.mxu0 %v1142
      %1233 = vmatprep.subr.mxu0 0.0
      %1234 = vmatpush1.msra.mxu0 %v1143
      %1235 = vmatprep.subr.mxu0 0.0
      %1236 = vmatpush1.msra.mxu0 %v1144
      %1237 = vmatprep.subr.mxu0 0.0
      %1238 = vmatpush1.msra.mxu0 %v1145
      %1239 = vmatprep.subr.mxu0 0.0
      %1240 = vmatpush1.msra.mxu0 %v1146
      %1241 = vmatprep.subr.mxu0 0.0
      %1242 = vmatpush1.msra.mxu0 %v1147
      %1243 = vmatprep.subr.mxu0 0.0
      %1244 = vmatpush1.msra.mxu0 %v1148
      %1245 = vmatprep.subr.mxu0 0.0
      %1246 = vmatpush1.msra.mxu0 %v1149
      %1247 = vmatprep.subr.mxu0 0.0
      %1248 = vmatpush1.msra.mxu0 %v1150
      %1249 = vmatprep.subr.mxu0 0.0
      %1250 = vmatpush1.msra.mxu0 %v1151
      %1251 = vmatprep.subr.mxu0 0.0
      %1252 = vmatpush1.msra.mxu0 %v1152
      %1253 = vmatprep.subr.mxu0 0.0
      %1254 = vmatpush1.msra.mxu0 %v1153
      %1255 = vmatprep.subr.mxu0 0.0
      %1256 = vmatpush1.msra.mxu0 %v1154
      %1257 = vmatprep.subr.mxu0 0.0
      %1258 = vmatpush1.msra.mxu0 %v1155
      %1259 = vmatprep.subr.mxu0 0.0
      %1260 = vmatpush1.msra.mxu0 %v1156
      %1261 = vmatprep.mubr.f32.mxu0 %v1117
      %1262 = vmatmul.mubr.f32.gmra.mrb[0].mxu0 %v1116
      %v1263 = vpop.f32.mrb[0].mxu0
      %v1264 = vadd.f32 %v1195, %v1263
      %v1265 = vpop.f32.mrb[0].mxu0
      %1266 = vmatprep.mubr.f32.mxu0 %v1121
      %1267 = vmatmul.mubr.f32.gmra.mrb[0].mxu0 %v1120
      %v1268 = vpop.f32.mrb[0].mxu0
      %v1269 = vadd.f32 %v1195, %v1268
      %v1270 = vpop.f32.mrb[0].mxu0
      %1271 = vdwg.mxu0
      %1272 = vmatprep.subr.mxu0 0.0
      %1273 = vmatpush1.msra.mxu0 %v1157
      %1274 = vmatprep.subr.mxu0 0.0
      %1275 = vmatpush1.msra.mxu0 %v1158
      %1276 = vmatprep.subr.mxu0 0.0
      %1277 = vmatpush1.msra.mxu0 %v1159
      %1278 = vmatprep.subr.mxu0 0.0
      %1279 = vmatpush1.msra.mxu0 %v1160
      %1280 = vmatprep.subr.mxu0 0.0
      %1281 = vmatpush1.msra.mxu0 %v1161
      %1282 = vmatprep.subr.mxu0 0.0
      %1283 = vmatpush1.msra.mxu0 %v1162
      %1284 = vmatprep.subr.mxu0 0.0
      %1285 = vmatpush1.msra.mxu0 %v1163
      %1286 = vmatprep.subr.mxu0 0.0
      %1287 = vmatpush1.msra.mxu0 %v1164
      %1288 = vmatprep.subr.mxu0 0.0
      %1289 = vmatpush1.msra.mxu0 %v1165
      %1290 = vmatprep.subr.mxu0 0.0
      %1291 = vmatpush1.msra.mxu0 %v1166
      %1292 = vmatprep.subr.mxu0 0.0
      %1293 = vmatpush1.msra.mxu0 %v1167
      %1294 = vmatprep.subr.mxu0 0.0
      %1295 = vmatpush1.msra.mxu0 %v1168
      %1296 = vmatprep.subr.mxu0 0.0
      %1297 = vmatpush1.msra.mxu0 %v1169
      %1298 = vmatprep.subr.mxu0 0.0
      %1299 = vmatpush1.msra.mxu0 %v1170
      %1300 = vmatprep.subr.mxu0 0.0
      %1301 = vmatpush1.msra.mxu0 %v1171
      %1302 = vmatprep.subr.mxu0 0.0
      %1303 = vmatpush1.msra.mxu0 %v1172
      %1304 = vmatprep.subr.mxu0 0.0
      %1305 = vmatpush1.msra.mxu0 %v1173
      %1306 = vmatprep.subr.mxu0 0.0
      %1307 = vmatpush1.msra.mxu0 %v1174
      %1308 = vmatprep.subr.mxu0 0.0
      %1309 = vmatpush1.msra.mxu0 %v1175
      %1310 = vmatprep.subr.mxu0 0.0
      %1311 = vmatpush1.msra.mxu0 %v1176
      %1312 = vmatprep.subr.mxu0 0.0
      %1313 = vmatpush1.msra.mxu0 %v1177
      %1314 = vmatprep.subr.mxu0 0.0
      %1315 = vmatpush1.msra.mxu0 %v1178
      %1316 = vmatprep.subr.mxu0 0.0
      %1317 = vmatpush1.msra.mxu0 %v1179
      %1318 = vmatprep.subr.mxu0 0.0
      %1319 = vmatpush1.msra.mxu0 %v1180
      %1320 = vmatprep.subr.mxu0 0.0
      %1321 = vmatpush1.msra.mxu0 %v1181
      %1322 = vmatprep.subr.mxu0 0.0
      %1323 = vmatpush1.msra.mxu0 %v1182
      %1324 = vmatprep.subr.mxu0 0.0
      %1325 = vmatpush1.msra.mxu0 %v1183
      %1326 = vmatprep.subr.mxu0 0.0
      %1327 = vmatpush1.msra.mxu0 %v1184
      %1328 = vmatprep.subr.mxu0 0.0
      %1329 = vmatpush1.msra.mxu0 %v1185
      %1330 = vmatprep.subr.mxu0 0.0
      %1331 = vmatpush1.msra.mxu0 %v1186
      %1332 = vmatprep.subr.mxu0 0.0
      %1333 = vmatpush1.msra.mxu0 %v1187
      %1334 = vmatprep.subr.mxu0 0.0
      %1335 = vmatpush1.msra.mxu0 %v1188
      %1336 = vmatprep.mubr.f32.mxu0 %v1119
      %1337 = vmatmul.mubr.f32.gmra.mrb[0].mxu0 %v1118
      %v1338 = vpop.f32.mrb[0].mxu0
      %v1339 = vadd.f32 %v1264, %v1338
      %v1340 = vpop.f32.mrb[0].mxu0
      %1341 = vmatprep.mubr.f32.mxu0 %v1123
      %1342 = vmatmul.mubr.f32.gmra.mrb[0].mxu0 %v1122
      %v1343 = vpop.f32.mrb[0].mxu0
      %v1344 = vadd.f32 %v1269, %v1343
      %v1345 = vpop.f32.mrb[0].mxu0
      %1346 = vdwg.mxu0
      %vm1347 = vcmp.eq.s32.totalorder %v33, 2
      %vm1348 = vcmp.eq.s32.totalorder %v34, 2
      %v1349 = vld [vmem:[#allocation2] sm:$0xff]
      %v1350 = vld [vmem:[#allocation2 + $0x8] sm:$0xff]
      %v1351 = vsel %vm1347, 1, 0
      %v1352 = vsel %vm1348, 1, 0
      %1353 = vset.pattern.permute.xlu0 0
      %1354 = vperm.xlu0 %1353, %v1351
      %v1355 = vpop.permute.xlu0 %1354
      %1356 = vset.pattern.permute.xlu0 0
      %1357 = vperm.xlu0 %1356, %v1352
      %v1358 = vpop.permute.xlu0 %1357
      %vm1359 = vcmp.eq.s32.totalorder %v1355, 1
      %vm1360 = vcmp.eq.s32.totalorder %v1358, 1
      %v1361 = vsel %vm1359, %v1339, %v1349
      %v1362 = vsel %vm1360, %v1344, %v1350
      %1363 = vst [vmem:[#allocation2] sm:$0xff] %v1361
      %1364 = vst [vmem:[#allocation2 + $0x8] sm:$0xff] %v1362
    $region37: #{modular_decoder_forward.1} parent=1 // pred_fallthru
      _
    %v1365 = vld [vmem:[#allocation2] sm:$0xff]
    %v1366 = vld [vmem:[#allocation2 + $0x8] sm:$0xff]
    %v1367 = vxor.u32 %v1365, 2147483648
    %v1368 = vxor.u32 %v1366, 2147483648
    %v1369 = vmul.f32 %v1367, 1.442695
    %v1370 = vpow.pop %v1369
    %v1371 = vmul.f32 %v1368, 1.442695
    %v1372 = vpow.pop %v1371
    %v1373 = vadd.f32 %v1370, 1.0
    %v1374 = vadd.f32 %v1372, 1.0
    %v1375 = vrcp.pop %v1373
    %v1376 = vmul.f32 1.0, %v1375
    %v1377 = vrcp.pop %v1374
    %v1378 = vmul.f32 1.0, %v1377
    %1379 = vst [vmem:[#allocation5] sm:$0xff] %v1376
    %1380 = vst [vmem:[#allocation5 + $0x8] sm:$0xff] %v1378
    // Predicated region
    $region38: #{modular_decoder_forward.1} parent=1 // pred_check
      _
    $region39: #{modular_decoder_forward.1} parent=1 // pred_check_branch
      %1382 = sbr.rel (0) target = $region41
    $region40: #{modular_decoder_forward.1} parent=1 // pred_region
      %s1384 = ssub.s32 256, 256
      %1385 = vsyncadd [#allocation6], %s1384
      %s1386 = sshll.u32 [#allocation5], 4
      %s1387 = int_to_ptr.vmem [resolvable:$true] %s1386
      %1392 = dma.vmem_to_hbm [thread:$0]  %s1387, 256, %s7, [#allocation6], 128, 128, 8
    $region41: #{modular_decoder_forward.1} parent=1 // pred_fallthru
      _
    // Predicated region
    $region42: #{modular_decoder_forward.1} parent=1 // pred_check
      _
    $region43: #{modular_decoder_forward.1} parent=1 // pred_check_branch
      %1394 = sbr.rel (0) target = $region45
    $region44: #{modular_decoder_forward.1} parent=1 // pred_region
      %1395 = dma.done [#allocation6], 256
    $region45: #{modular_decoder_forward.1} parent=1 // pred_fallthru
      _
    %1396 = vsyncpa [#allocation6], 1

</llo_original>
